<compile_context>
chip_gen: v5e
topology: v5e:2x2
jax: 0.10.0
libtpu: 0.0.40
codegen_flags: <defaults>
</compile_context>

<pallas_src>
import functools

import jax
import jax.numpy as jnp
from jax import lax
from jax.experimental import pallas as pl
from jax.experimental.pallas import tpu as pltpu


# ---------------------------------------------------------------------------
# Problem sizes (small, consistent with the module's forward)
# ---------------------------------------------------------------------------
BATCH = 2          # batch_size
SEQ = 8            # time_length
INPUT_DIM = 16     # mel_filters  (params.input_dim)
HIDDEN = 32        # params.hidden_dim
N_LAYERS = 2       # params.lstm_n_layers
LINEAR_IN = HIDDEN      # params.linear_in
LINEAR_OUT = 4          # params.linear_out


# ---------------------------------------------------------------------------
# Pallas kernel: whole stacked-LSTM recurrence + final Linear in one kernel.
# ---------------------------------------------------------------------------
def _lstm_net_kernel(x_ref,        # (T*B, D)    time-major, rows grouped by t
                     wih0_ref,     # (D, 4H)     layer-0 input weights
                     whhblk_ref,   # (2H, 8H)    block-diag [Whh0 0; 0 Whh1]
                     b0_ref,       # (1, 4H)     layer-0 bias (b_ih + b_hh)
                     wih1_ref,     # (H, 4H)     layer-1 input weights
                     b1_ref,       # (1, 4H)     layer-1 bias (b_ih + b_hh)
                     wlin_ref,     # (H, O)      final linear weight (pre-T)
                     blin_ref,     # (1, O)      final linear bias
                     out_ref):     # (B, O)
    H = HIDDEN
    B = BATCH
    T = SEQ

    # ---- hoist all weight loads out of the recurrence (read VMEM once) ----
    x2d = x_ref[...]
    wih0 = wih0_ref[...]
    whh_blk = whhblk_ref[...]
    b0 = b0_ref[...]
    wih1 = wih1_ref[...]
    b1 = b1_ref[...]
    wlin = wlin_ref[...]
    blin = blin_ref[...]

    # ---- hoisted layer-0 input projection: one matmul for all timesteps ----
    # (T*B, D) @ (D, 4H) -> (T*B, 4H); the x_t @ W_ih0 term has no serial dep.
    xw0 = jnp.dot(x2d, wih0, preferred_element_type=jnp.float32)

    def cell(gates, c):
        # PyTorch LSTM gate layout along the 4H axis: [i, f, g, o].
        # Two full-width EUP passes; static lane slices of the activated vreg.
        sg = jax.nn.sigmoid(gates)
        tg = jnp.tanh(gates)
        i = sg[:, 0 * H:1 * H]
        f = sg[:, 1 * H:2 * H]
        g = tg[:, 2 * H:3 * H]
        o = sg[:, 3 * H:4 * H]
        c_new = f * c + i * g
        h_new = o * jnp.tanh(c_new)
        return h_new, c_new

    zeros = jnp.zeros((B, H), jnp.float32)
    h0, c0, h1, c1 = zeros, zeros, zeros, zeros

    # ---- fully unrolled recurrence (T = 8 is static) ----
    for t in range(T):
        # One fused recurrent matmul for both layers:
        # [h0 | h1] (B, 2H) @ blockdiag(Whh0, Whh1) (2H, 8H) -> (B, 8H)
        hh = jnp.concatenate([h0, h1], axis=-1)
        rec = jnp.dot(hh, whh_blk, preferred_element_type=jnp.float32)
        rec0 = rec[:, 0:4 * H]          # vreg-aligned slice (lane 0..127)
        rec1 = rec[:, 4 * H:8 * H]      # vreg-aligned slice (lane 128..255)

        # layer 0: precomputed input projection rows for this timestep
        gates0 = xw0[t * B:(t + 1) * B, :] + rec0 + b0
        h0, c0 = cell(gates0, c0)

        # layer 1: input is *current* h0 (serial dependency, kept in-loop)
        gates1 = (jnp.dot(h0, wih1, preferred_element_type=jnp.float32)
                  + rec1 + b1)
        h1, c1 = cell(gates1, c1)

    # sentiment = lstm_out[:, -1] == h1 after the last step; logit = Linear(.)
    out_ref[...] = (jnp.dot(h1, wlin, preferred_element_type=jnp.float32)
                    + blin)


@functools.partial(jax.jit, static_argnames=())
def net_forward(x, params):
    """x: (batch, time, mel_filters) float32. Returns logits (batch, linear_out)."""
    (wih0, whh0, b0, wih1, whh1, b1, wlin, blin) = params
    B, T, D = x.shape
    H = HIDDEN

    # time-major, then collapse (T, B) so the kernel does one hoisted matmul
    x2d = jnp.transpose(x, (1, 0, 2)).reshape(T * B, D)

    # block-diagonal recurrent weight [Whh0 0; 0 Whh1]: zero padding guarantees
    # layer-0 state cannot leak into layer-1 gates (and vice versa).
    whh_blk = jnp.zeros((2 * H, 8 * H), jnp.float32)
    whh_blk = whh_blk.at[0:H, 0:4 * H].set(whh0)
    whh_blk = whh_blk.at[H:2 * H, 4 * H:8 * H].set(whh1)

    vmem = pl.BlockSpec(memory_space=pltpu.MemorySpace.VMEM)
    return pl.pallas_call(
        _lstm_net_kernel,
        out_shape=jax.ShapeDtypeStruct((B, LINEAR_OUT), jnp.float32),
        in_specs=[vmem] * 8,
        out_specs=vmem,
    )(x2d, wih0, whh_blk, b0, wih1, b1, wlin, blin)


# ---------------------------------------------------------------------------
# Deterministic parameter construction (synthetic; no checkpoint loading).
# LSTM weights ~ U(-1/sqrt(H), 1/sqrt(H)) like PyTorch defaults; Linear weight
# uses xavier_uniform per Net._init_weights.
# ---------------------------------------------------------------------------
def make_params(key):
    ks = jax.random.split(key, 10)
    k = 1.0 / jnp.sqrt(HIDDEN)

    def uni(kk, shape, bound):
        return jax.random.uniform(kk, shape, jnp.float32, -bound, bound)

    # layer 0 (input_dim -> hidden), stored pre-transposed: (in, 4H)
    wih0 = uni(ks[0], (INPUT_DIM, 4 * HIDDEN), k)
    whh0 = uni(ks[1], (HIDDEN, 4 * HIDDEN), k)
    b0 = (uni(ks[2], (1, 4 * HIDDEN), k) + uni(ks[3], (1, 4 * HIDDEN), k))  # b_ih + b_hh

    # layer 1 (hidden -> hidden)
    wih1 = uni(ks[4], (HIDDEN, 4 * HIDDEN), k)
    whh1 = uni(ks[5], (HIDDEN, 4 * HIDDEN), k)
    b1 = (uni(ks[6], (1, 4 * HIDDEN), k) + uni(ks[7], (1, 4 * HIDDEN), k))

    # linear: xavier_uniform_ on a (out, in) torch weight; stored as (in, out)
    xav = jnp.sqrt(6.0 / (LINEAR_IN + LINEAR_OUT))
    wlin = uni(ks[8], (LINEAR_IN, LINEAR_OUT), xav)
    blin = uni(ks[9], (1, LINEAR_OUT), 1.0 / jnp.sqrt(LINEAR_IN))  # torch default bias init

    return (wih0, whh0, b0, wih1, whh1, b1, wlin, blin)


# Pure-JAX reference (same math, unfused) for a correctness check.
def net_forward_ref(x, params):
    (wih0, whh0, b0, wih1, whh1, b1, wlin, blin) = params
    B = x.shape[0]
    H = HIDDEN

    def cell(x_t, h, c, wih, whh, b):
        g = x_t @ wih + h @ whh + b
        i = jax.nn.sigmoid(g[:, 0 * H:1 * H])
        f = jax.nn.sigmoid(g[:, 1 * H:2 * H])
        gg = jnp.tanh(g[:, 2 * H:3 * H])
        o = jax.nn.sigmoid(g[:, 3 * H:4 * H])
        c = f * c + i * gg
        h = o * jnp.tanh(c)
        return h, c

    def scan_fn(carry, x_t):
        h0, c0, h1, c1 = carry
        h0, c0 = cell(x_t, h0, c0, wih0, whh0, b0)
        h1, c1 = cell(h0, h1, c1, wih1, whh1, b1)
        return (h0, c0, h1, c1), None

    z = jnp.zeros((B, H), jnp.float32)
    (h0, c0, h1, c1), _ = lax.scan(scan_fn, (z, z, z, z),
                                   jnp.transpose(x, (1, 0, 2)))
    return h1 @ wlin + blin


if __name__ == "__main__":
    key = jax.random.PRNGKey(0)
    kx, kp = jax.random.split(key)
    x = jax.random.normal(kx, (BATCH, SEQ, INPUT_DIM), jnp.float32)
    params = make_params(kp)

    out = net_forward(x, params)
    out = jax.block_until_ready(out)

    ref = net_forward_ref(x, params)
    assert out.shape == (BATCH, LINEAR_OUT)
    assert jnp.allclose(out, ref, atol=1e-4, rtol=1e-4), (out, ref)

    # TODO(synk): if more independent sequences are available per call, stack
    # them into the batch dim (and add a "parallel" batch grid axis for v7x's
    # second TensorCore); per-step latency is unchanged up to B=8 sublanes.

    print("KERNEL_OK")
</pallas_src>

<mosaic_0001>
module attributes {stable_mosaic.version = 11 : i64} {
  func.func @_lstm_net_kernel(%arg0: memref<16x16xf32, #tpu.memory_space<vmem>>, %arg1: memref<16x128xf32, #tpu.memory_space<vmem>>, %arg2: memref<64x256xf32, #tpu.memory_space<vmem>>, %arg3: memref<1x128xf32, #tpu.memory_space<vmem>>, %arg4: memref<32x128xf32, #tpu.memory_space<vmem>>, %arg5: memref<1x128xf32, #tpu.memory_space<vmem>>, %arg6: memref<32x4xf32, #tpu.memory_space<vmem>>, %arg7: memref<1x4xf32, #tpu.memory_space<vmem>>, %arg8: memref<2x4xf32, #tpu.memory_space<vmem>>) attributes {dimension_semantics = [], scalar_prefetch = 0 : i64, scratch_operands = 0 : i64, tpu.core_type = #tpu.core_type<tc>} {
    %c0 = arith.constant 0 : index
    %c0_0 = arith.constant 0 : index
    %0 = vector.load %arg0[%c0, %c0_0] : memref<16x16xf32, #tpu.memory_space<vmem>>, vector<16x16xf32>
    %c0_1 = arith.constant 0 : index
    %c0_2 = arith.constant 0 : index
    %1 = vector.load %arg1[%c0_1, %c0_2] : memref<16x128xf32, #tpu.memory_space<vmem>>, vector<16x128xf32>
    %c0_3 = arith.constant 0 : index
    %c0_4 = arith.constant 0 : index
    %2 = vector.load %arg2[%c0_3, %c0_4] : memref<64x256xf32, #tpu.memory_space<vmem>>, vector<64x256xf32>
    %c0_5 = arith.constant 0 : index
    %c0_6 = arith.constant 0 : index
    %3 = vector.load %arg3[%c0_5, %c0_6] : memref<1x128xf32, #tpu.memory_space<vmem>>, vector<1x128xf32>
    %c0_7 = arith.constant 0 : index
    %c0_8 = arith.constant 0 : index
    %4 = vector.load %arg4[%c0_7, %c0_8] : memref<32x128xf32, #tpu.memory_space<vmem>>, vector<32x128xf32>
    %c0_9 = arith.constant 0 : index
    %c0_10 = arith.constant 0 : index
    %5 = vector.load %arg5[%c0_9, %c0_10] : memref<1x128xf32, #tpu.memory_space<vmem>>, vector<1x128xf32>
    %c0_11 = arith.constant 0 : index
    %c0_12 = arith.constant 0 : index
    %6 = vector.load %arg6[%c0_11, %c0_12] : memref<32x4xf32, #tpu.memory_space<vmem>>, vector<32x4xf32>
    %c0_13 = arith.constant 0 : index
    %c0_14 = arith.constant 0 : index
    %7 = vector.load %arg7[%c0_13, %c0_14] : memref<1x4xf32, #tpu.memory_space<vmem>>, vector<1x4xf32>
    %cst = arith.constant dense<0.000000e+00> : vector<16x128xf32>
    %8 = tpu.matmul %0, %1, %cst {dimension_numbers = #tpu.dot_dimension_numbers<[1], [0], [0], [1], [0, 0, 1, 1], [], []>} : vector<16x16xf32>, vector<16x128xf32>, vector<16x128xf32> -> vector<16x128xf32>
    %cst_15 = arith.constant 0.000000e+00 : f32
    %9 = vector.broadcast %cst_15 : f32 to vector<2x32xf32>
    %10 = tpu.concatenate %9, %9 in 1 : vector<2x32xf32>, vector<2x32xf32> -> vector<2x64xf32>
    %cst_16 = arith.constant dense<0.000000e+00> : vector<2x256xf32>
    %11 = tpu.matmul %10, %2, %cst_16 {dimension_numbers = #tpu.dot_dimension_numbers<[1], [0], [0], [1], [0, 0, 1, 1], [], []>} : vector<2x64xf32>, vector<64x256xf32>, vector<2x256xf32> -> vector<2x256xf32>
    %12 = vector.extract_strided_slice %11 {offsets = [0, 0], sizes = [2, 128], strides = [1, 1]} : vector<2x256xf32> to vector<2x128xf32>
    %13 = vector.extract_strided_slice %11 {offsets = [0, 128], sizes = [2, 128], strides = [1, 1]} : vector<2x256xf32> to vector<2x128xf32>
    %14 = vector.extract_strided_slice %8 {offsets = [0, 0], sizes = [2, 128], strides = [1, 1]} : vector<16x128xf32> to vector<2x128xf32>
    %15 = arith.addf %14, %12 : vector<2x128xf32>
    %16 = vector.broadcast %3 : vector<1x128xf32> to vector<2x128xf32>
    %17 = arith.addf %15, %16 : vector<2x128xf32>
    %18 = arith.negf %17 : vector<2x128xf32>
    %19 = math.exp %18 : vector<2x128xf32>
    %cst_17 = arith.constant 1.000000e+00 : f32
    %20 = vector.broadcast %cst_17 : f32 to vector<2x128xf32>
    %21 = arith.addf %20, %19 : vector<2x128xf32>
    %22 = arith.divf %20, %21 : vector<2x128xf32>
    %23 = math.tanh %17 : vector<2x128xf32>
    %24 = vector.extract_strided_slice %22 {offsets = [0, 0], sizes = [2, 32], strides = [1, 1]} : vector<2x128xf32> to vector<2x32xf32>
    %25 = vector.extract_strided_slice %22 {offsets = [0, 32], sizes = [2, 32], strides = [1, 1]} : vector<2x128xf32> to vector<2x32xf32>
    %26 = vector.extract_strided_slice %23 {offsets = [0, 64], sizes = [2, 32], strides = [1, 1]} : vector<2x128xf32> to vector<2x32xf32>
    %27 = vector.extract_strided_slice %22 {offsets = [0, 96], sizes = [2, 32], strides = [1, 1]} : vector<2x128xf32> to vector<2x32xf32>
    %28 = arith.mulf %25, %9 : vector<2x32xf32>
    %29 = arith.mulf %24, %26 : vector<2x32xf32>
    %30 = arith.addf %28, %29 : vector<2x32xf32>
    %31 = math.tanh %30 : vector<2x32xf32>
    %32 = arith.mulf %27, %31 : vector<2x32xf32>
    %cst_18 = arith.constant dense<0.000000e+00> : vector<2x128xf32>
    %33 = tpu.matmul %32, %4, %cst_18 {dimension_numbers = #tpu.dot_dimension_numbers<[1], [0], [0], [1], [0, 0, 1, 1], [], []>} : vector<2x32xf32>, vector<32x128xf32>, vector<2x128xf32> -> vector<2x128xf32>
    %34 = arith.addf %33, %13 : vector<2x128xf32>
    %35 = vector.broadcast %5 : vector<1x128xf32> to vector<2x128xf32>
    %36 = arith.addf %34, %35 : vector<2x128xf32>
    %37 = arith.negf %36 : vector<2x128xf32>
    %38 = math.exp %37 : vector<2x128xf32>
    %cst_19 = arith.constant 1.000000e+00 : f32
    %39 = vector.broadcast %cst_19 : f32 to vector<2x128xf32>
    %40 = arith.addf %39, %38 : vector<2x128xf32>
    %41 = arith.divf %39, %40 : vector<2x128xf32>
    %42 = math.tanh %36 : vector<2x128xf32>
    %43 = vector.extract_strided_slice %41 {offsets = [0, 0], sizes = [2, 32], strides = [1, 1]} : vector<2x128xf32> to vector<2x32xf32>
    %44 = vector.extract_strided_slice %41 {offsets = [0, 32], sizes = [2, 32], strides = [1, 1]} : vector<2x128xf32> to vector<2x32xf32>
    %45 = vector.extract_strided_slice %42 {offsets = [0, 64], sizes = [2, 32], strides = [1, 1]} : vector<2x128xf32> to vector<2x32xf32>
    %46 = vector.extract_strided_slice %41 {offsets = [0, 96], sizes = [2, 32], strides = [1, 1]} : vector<2x128xf32> to vector<2x32xf32>
    %47 = arith.mulf %44, %9 : vector<2x32xf32>
    %48 = arith.mulf %43, %45 : vector<2x32xf32>
    %49 = arith.addf %47, %48 : vector<2x32xf32>
    %50 = math.tanh %49 : vector<2x32xf32>
    %51 = arith.mulf %46, %50 : vector<2x32xf32>
    %52 = tpu.concatenate %32, %51 in 1 : vector<2x32xf32>, vector<2x32xf32> -> vector<2x64xf32>
    %cst_20 = arith.constant dense<0.000000e+00> : vector<2x256xf32>
    %53 = tpu.matmul %52, %2, %cst_20 {dimension_numbers = #tpu.dot_dimension_numbers<[1], [0], [0], [1], [0, 0, 1, 1], [], []>} : vector<2x64xf32>, vector<64x256xf32>, vector<2x256xf32> -> vector<2x256xf32>
    %54 = vector.extract_strided_slice %53 {offsets = [0, 0], sizes = [2, 128], strides = [1, 1]} : vector<2x256xf32> to vector<2x128xf32>
    %55 = vector.extract_strided_slice %53 {offsets = [0, 128], sizes = [2, 128], strides = [1, 1]} : vector<2x256xf32> to vector<2x128xf32>
    %56 = vector.extract_strided_slice %8 {offsets = [2, 0], sizes = [2, 128], strides = [1, 1]} : vector<16x128xf32> to vector<2x128xf32>
    %57 = arith.addf %56, %54 : vector<2x128xf32>
    %58 = vector.broadcast %3 : vector<1x128xf32> to vector<2x128xf32>
    %59 = arith.addf %57, %58 : vector<2x128xf32>
    %60 = arith.negf %59 : vector<2x128xf32>
    %61 = math.exp %60 : vector<2x128xf32>
    %cst_21 = arith.constant 1.000000e+00 : f32
    %62 = vector.broadcast %cst_21 : f32 to vector<2x128xf32>
    %63 = arith.addf %62, %61 : vector<2x128xf32>
    %64 = arith.divf %62, %63 : vector<2x128xf32>
    %65 = math.tanh %59 : vector<2x128xf32>
    %66 = vector.extract_strided_slice %64 {offsets = [0, 0], sizes = [2, 32], strides = [1, 1]} : vector<2x128xf32> to vector<2x32xf32>
    %67 = vector.extract_strided_slice %64 {offsets = [0, 32], sizes = [2, 32], strides = [1, 1]} : vector<2x128xf32> to vector<2x32xf32>
    %68 = vector.extract_strided_slice %65 {offsets = [0, 64], sizes = [2, 32], strides = [1, 1]} : vector<2x128xf32> to vector<2x32xf32>
    %69 = vector.extract_strided_slice %64 {offsets = [0, 96], sizes = [2, 32], strides = [1, 1]} : vector<2x128xf32> to vector<2x32xf32>
    %70 = arith.mulf %67, %30 : vector<2x32xf32>
    %71 = arith.mulf %66, %68 : vector<2x32xf32>
    %72 = arith.addf %70, %71 : vector<2x32xf32>
    %73 = math.tanh %72 : vector<2x32xf32>
    %74 = arith.mulf %69, %73 : vector<2x32xf32>
    %cst_22 = arith.constant dense<0.000000e+00> : vector<2x128xf32>
    %75 = tpu.matmul %74, %4, %cst_22 {dimension_numbers = #tpu.dot_dimension_numbers<[1], [0], [0], [1], [0, 0, 1, 1], [], []>} : vector<2x32xf32>, vector<32x128xf32>, vector<2x128xf32> -> vector<2x128xf32>
    %76 = arith.addf %75, %55 : vector<2x128xf32>
    %77 = vector.broadcast %5 : vector<1x128xf32> to vector<2x128xf32>
    %78 = arith.addf %76, %77 : vector<2x128xf32>
    %79 = arith.negf %78 : vector<2x128xf32>
    %80 = math.exp %79 : vector<2x128xf32>
    %cst_23 = arith.constant 1.000000e+00 : f32
    %81 = vector.broadcast %cst_23 : f32 to vector<2x128xf32>
    %82 = arith.addf %81, %80 : vector<2x128xf32>
    %83 = arith.divf %81, %82 : vector<2x128xf32>
    %84 = math.tanh %78 : vector<2x128xf32>
    %85 = vector.extract_strided_slice %83 {offsets = [0, 0], sizes = [2, 32], strides = [1, 1]} : vector<2x128xf32> to vector<2x32xf32>
    %86 = vector.extract_strided_slice %83 {offsets = [0, 32], sizes = [2, 32], strides = [1, 1]} : vector<2x128xf32> to vector<2x32xf32>
    %87 = vector.extract_strided_slice %84 {offsets = [0, 64], sizes = [2, 32], strides = [1, 1]} : vector<2x128xf32> to vector<2x32xf32>
    %88 = vector.extract_strided_slice %83 {offsets = [0, 96], sizes = [2, 32], strides = [1, 1]} : vector<2x128xf32> to vector<2x32xf32>
    %89 = arith.mulf %86, %49 : vector<2x32xf32>
    %90 = arith.mulf %85, %87 : vector<2x32xf32>
    %91 = arith.addf %89, %90 : vector<2x32xf32>
    %92 = math.tanh %91 : vector<2x32xf32>
    %93 = arith.mulf %88, %92 : vector<2x32xf32>
    %94 = tpu.concatenate %74, %93 in 1 : vector<2x32xf32>, vector<2x32xf32> -> vector<2x64xf32>
    %cst_24 = arith.constant dense<0.000000e+00> : vector<2x256xf32>
    %95 = tpu.matmul %94, %2, %cst_24 {dimension_numbers = #tpu.dot_dimension_numbers<[1], [0], [0], [1], [0, 0, 1, 1], [], []>} : vector<2x64xf32>, vector<64x256xf32>, vector<2x256xf32> -> vector<2x256xf32>
    %96 = vector.extract_strided_slice %95 {offsets = [0, 0], sizes = [2, 128], strides = [1, 1]} : vector<2x256xf32> to vector<2x128xf32>
    %97 = vector.extract_strided_slice %95 {offsets = [0, 128], sizes = [2, 128], strides = [1, 1]} : vector<2x256xf32> to vector<2x128xf32>
    %98 = vector.extract_strided_slice %8 {offsets = [4, 0], sizes = [2, 128], strides = [1, 1]} : vector<16x128xf32> to vector<2x128xf32>
    %99 = arith.addf %98, %96 : vector<2x128xf32>
    %100 = vector.broadcast %3 : vector<1x128xf32> to vector<2x128xf32>
    %101 = arith.addf %99, %100 : vector<2x128xf32>
    %102 = arith.negf %101 : vector<2x128xf32>
    %103 = math.exp %102 : vector<2x128xf32>
    %cst_25 = arith.constant 1.000000e+00 : f32
    %104 = vector.broadcast %cst_25 : f32 to vector<2x128xf32>
    %105 = arith.addf %104, %103 : vector<2x128xf32>
    %106 = arith.divf %104, %105 : vector<2x128xf32>
    %107 = math.tanh %101 : vector<2x128xf32>
    %108 = vector.extract_strided_slice %106 {offsets = [0, 0], sizes = [2, 32], strides = [1, 1]} : vector<2x128xf32> to vector<2x32xf32>
    %109 = vector.extract_strided_slice %106 {offsets = [0, 32], sizes = [2, 32], strides = [1, 1]} : vector<2x128xf32> to vector<2x32xf32>
    %110 = vector.extract_strided_slice %107 {offsets = [0, 64], sizes = [2, 32], strides = [1, 1]} : vector<2x128xf32> to vector<2x32xf32>
    %111 = vector.extract_strided_slice %106 {offsets = [0, 96], sizes = [2, 32], strides = [1, 1]} : vector<2x128xf32> to vector<2x32xf32>
    %112 = arith.mulf %109, %72 : vector<2x32xf32>
    %113 = arith.mulf %108, %110 : vector<2x32xf32>
    %114 = arith.addf %112, %113 : vector<2x32xf32>
    %115 = math.tanh %114 : vector<2x32xf32>
    %116 = arith.mulf %111, %115 : vector<2x32xf32>
    %cst_26 = arith.constant dense<0.000000e+00> : vector<2x128xf32>
    %117 = tpu.matmul %116, %4, %cst_26 {dimension_numbers = #tpu.dot_dimension_numbers<[1], [0], [0], [1], [0, 0, 1, 1], [], []>} : vector<2x32xf32>, vector<32x128xf32>, vector<2x128xf32> -> vector<2x128xf32>
    %118 = arith.addf %117, %97 : vector<2x128xf32>
    %119 = vector.broadcast %5 : vector<1x128xf32> to vector<2x128xf32>
    %120 = arith.addf %118, %119 : vector<2x128xf32>
    %121 = arith.negf %120 : vector<2x128xf32>
    %122 = math.exp %121 : vector<2x128xf32>
    %cst_27 = arith.constant 1.000000e+00 : f32
    %123 = vector.broadcast %cst_27 : f32 to vector<2x128xf32>
    %124 = arith.addf %123, %122 : vector<2x128xf32>
    %125 = arith.divf %123, %124 : vector<2x128xf32>
    %126 = math.tanh %120 : vector<2x128xf32>
    %127 = vector.extract_strided_slice %125 {offsets = [0, 0], sizes = [2, 32], strides = [1, 1]} : vector<2x128xf32> to vector<2x32xf32>
    %128 = vector.extract_strided_slice %125 {offsets = [0, 32], sizes = [2, 32], strides = [1, 1]} : vector<2x128xf32> to vector<2x32xf32>
    %129 = vector.extract_strided_slice %126 {offsets = [0, 64], sizes = [2, 32], strides = [1, 1]} : vector<2x128xf32> to vector<2x32xf32>
    %130 = vector.extract_strided_slice %125 {offsets = [0, 96], sizes = [2, 32], strides = [1, 1]} : vector<2x128xf32> to vector<2x32xf32>
    %131 = arith.mulf %128, %91 : vector<2x32xf32>
    %132 = arith.mulf %127, %129 : vector<2x32xf32>
    %133 = arith.addf %131, %132 : vector<2x32xf32>
    %134 = math.tanh %133 : vector<2x32xf32>
    %135 = arith.mulf %130, %134 : vector<2x32xf32>
    %136 = tpu.concatenate %116, %135 in 1 : vector<2x32xf32>, vector<2x32xf32> -> vector<2x64xf32>
    %cst_28 = arith.constant dense<0.000000e+00> : vector<2x256xf32>
    %137 = tpu.matmul %136, %2, %cst_28 {dimension_numbers = #tpu.dot_dimension_numbers<[1], [0], [0], [1], [0, 0, 1, 1], [], []>} : vector<2x64xf32>, vector<64x256xf32>, vector<2x256xf32> -> vector<2x256xf32>
    %138 = vector.extract_strided_slice %137 {offsets = [0, 0], sizes = [2, 128], strides = [1, 1]} : vector<2x256xf32> to vector<2x128xf32>
    %139 = vector.extract_strided_slice %137 {offsets = [0, 128], sizes = [2, 128], strides = [1, 1]} : vector<2x256xf32> to vector<2x128xf32>
    %140 = vector.extract_strided_slice %8 {offsets = [6, 0], sizes = [2, 128], strides = [1, 1]} : vector<16x128xf32> to vector<2x128xf32>
    %141 = arith.addf %140, %138 : vector<2x128xf32>
    %142 = vector.broadcast %3 : vector<1x128xf32> to vector<2x128xf32>
    %143 = arith.addf %141, %142 : vector<2x128xf32>
    %144 = arith.negf %143 : vector<2x128xf32>
    %145 = math.exp %144 : vector<2x128xf32>
    %cst_29 = arith.constant 1.000000e+00 : f32
    %146 = vector.broadcast %cst_29 : f32 to vector<2x128xf32>
    %147 = arith.addf %146, %145 : vector<2x128xf32>
    %148 = arith.divf %146, %147 : vector<2x128xf32>
    %149 = math.tanh %143 : vector<2x128xf32>
    %150 = vector.extract_strided_slice %148 {offsets = [0, 0], sizes = [2, 32], strides = [1, 1]} : vector<2x128xf32> to vector<2x32xf32>
    %151 = vector.extract_strided_slice %148 {offsets = [0, 32], sizes = [2, 32], strides = [1, 1]} : vector<2x128xf32> to vector<2x32xf32>
    %152 = vector.extract_strided_slice %149 {offsets = [0, 64], sizes = [2, 32], strides = [1, 1]} : vector<2x128xf32> to vector<2x32xf32>
    %153 = vector.extract_strided_slice %148 {offsets = [0, 96], sizes = [2, 32], strides = [1, 1]} : vector<2x128xf32> to vector<2x32xf32>
    %154 = arith.mulf %151, %114 : vector<2x32xf32>
    %155 = arith.mulf %150, %152 : vector<2x32xf32>
    %156 = arith.addf %154, %155 : vector<2x32xf32>
    %157 = math.tanh %156 : vector<2x32xf32>
    %158 = arith.mulf %153, %157 : vector<2x32xf32>
    %cst_30 = arith.constant dense<0.000000e+00> : vector<2x128xf32>
    %159 = tpu.matmul %158, %4, %cst_30 {dimension_numbers = #tpu.dot_dimension_numbers<[1], [0], [0], [1], [0, 0, 1, 1], [], []>} : vector<2x32xf32>, vector<32x128xf32>, vector<2x128xf32> -> vector<2x128xf32>
    %160 = arith.addf %159, %139 : vector<2x128xf32>
    %161 = vector.broadcast %5 : vector<1x128xf32> to vector<2x128xf32>
    %162 = arith.addf %160, %161 : vector<2x128xf32>
    %163 = arith.negf %162 : vector<2x128xf32>
    %164 = math.exp %163 : vector<2x128xf32>
    %cst_31 = arith.constant 1.000000e+00 : f32
    %165 = vector.broadcast %cst_31 : f32 to vector<2x128xf32>
    %166 = arith.addf %165, %164 : vector<2x128xf32>
    %167 = arith.divf %165, %166 : vector<2x128xf32>
    %168 = math.tanh %162 : vector<2x128xf32>
    %169 = vector.extract_strided_slice %167 {offsets = [0, 0], sizes = [2, 32], strides = [1, 1]} : vector<2x128xf32> to vector<2x32xf32>
    %170 = vector.extract_strided_slice %167 {offsets = [0, 32], sizes = [2, 32], strides = [1, 1]} : vector<2x128xf32> to vector<2x32xf32>
    %171 = vector.extract_strided_slice %168 {offsets = [0, 64], sizes = [2, 32], strides = [1, 1]} : vector<2x128xf32> to vector<2x32xf32>
    %172 = vector.extract_strided_slice %167 {offsets = [0, 96], sizes = [2, 32], strides = [1, 1]} : vector<2x128xf32> to vector<2x32xf32>
    %173 = arith.mulf %170, %133 : vector<2x32xf32>
    %174 = arith.mulf %169, %171 : vector<2x32xf32>
    %175 = arith.addf %173, %174 : vector<2x32xf32>
    %176 = math.tanh %175 : vector<2x32xf32>
    %177 = arith.mulf %172, %176 : vector<2x32xf32>
    %178 = tpu.concatenate %158, %177 in 1 : vector<2x32xf32>, vector<2x32xf32> -> vector<2x64xf32>
    %cst_32 = arith.constant dense<0.000000e+00> : vector<2x256xf32>
    %179 = tpu.matmul %178, %2, %cst_32 {dimension_numbers = #tpu.dot_dimension_numbers<[1], [0], [0], [1], [0, 0, 1, 1], [], []>} : vector<2x64xf32>, vector<64x256xf32>, vector<2x256xf32> -> vector<2x256xf32>
    %180 = vector.extract_strided_slice %179 {offsets = [0, 0], sizes = [2, 128], strides = [1, 1]} : vector<2x256xf32> to vector<2x128xf32>
    %181 = vector.extract_strided_slice %179 {offsets = [0, 128], sizes = [2, 128], strides = [1, 1]} : vector<2x256xf32> to vector<2x128xf32>
    %182 = vector.extract_strided_slice %8 {offsets = [8, 0], sizes = [2, 128], strides = [1, 1]} : vector<16x128xf32> to vector<2x128xf32>
    %183 = arith.addf %182, %180 : vector<2x128xf32>
    %184 = vector.broadcast %3 : vector<1x128xf32> to vector<2x128xf32>
    %185 = arith.addf %183, %184 : vector<2x128xf32>
    %186 = arith.negf %185 : vector<2x128xf32>
    %187 = math.exp %186 : vector<2x128xf32>
    %cst_33 = arith.constant 1.000000e+00 : f32
    %188 = vector.broadcast %cst_33 : f32 to vector<2x128xf32>
    %189 = arith.addf %188, %187 : vector<2x128xf32>
    %190 = arith.divf %188, %189 : vector<2x128xf32>
    %191 = math.tanh %185 : vector<2x128xf32>
    %192 = vector.extract_strided_slice %190 {offsets = [0, 0], sizes = [2, 32], strides = [1, 1]} : vector<2x128xf32> to vector<2x32xf32>
    %193 = vector.extract_strided_slice %190 {offsets = [0, 32], sizes = [2, 32], strides = [1, 1]} : vector<2x128xf32> to vector<2x32xf32>
    %194 = vector.extract_strided_slice %191 {offsets = [0, 64], sizes = [2, 32], strides = [1, 1]} : vector<2x128xf32> to vector<2x32xf32>
    %195 = vector.extract_strided_slice %190 {offsets = [0, 96], sizes = [2, 32], strides = [1, 1]} : vector<2x128xf32> to vector<2x32xf32>
    %196 = arith.mulf %193, %156 : vector<2x32xf32>
    %197 = arith.mulf %192, %194 : vector<2x32xf32>
    %198 = arith.addf %196, %197 : vector<2x32xf32>
    %199 = math.tanh %198 : vector<2x32xf32>
    %200 = arith.mulf %195, %199 : vector<2x32xf32>
    %cst_34 = arith.constant dense<0.000000e+00> : vector<2x128xf32>
    %201 = tpu.matmul %200, %4, %cst_34 {dimension_numbers = #tpu.dot_dimension_numbers<[1], [0], [0], [1], [0, 0, 1, 1], [], []>} : vector<2x32xf32>, vector<32x128xf32>, vector<2x128xf32> -> vector<2x128xf32>
    %202 = arith.addf %201, %181 : vector<2x128xf32>
    %203 = vector.broadcast %5 : vector<1x128xf32> to vector<2x128xf32>
    %204 = arith.addf %202, %203 : vector<2x128xf32>
    %205 = arith.negf %204 : vector<2x128xf32>
    %206 = math.exp %205 : vector<2x128xf32>
    %cst_35 = arith.constant 1.000000e+00 : f32
    %207 = vector.broadcast %cst_35 : f32 to vector<2x128xf32>
    %208 = arith.addf %207, %206 : vector<2x128xf32>
    %209 = arith.divf %207, %208 : vector<2x128xf32>
    %210 = math.tanh %204 : vector<2x128xf32>
    %211 = vector.extract_strided_slice %209 {offsets = [0, 0], sizes = [2, 32], strides = [1, 1]} : vector<2x128xf32> to vector<2x32xf32>
    %212 = vector.extract_strided_slice %209 {offsets = [0, 32], sizes = [2, 32], strides = [1, 1]} : vector<2x128xf32> to vector<2x32xf32>
    %213 = vector.extract_strided_slice %210 {offsets = [0, 64], sizes = [2, 32], strides = [1, 1]} : vector<2x128xf32> to vector<2x32xf32>
    %214 = vector.extract_strided_slice %209 {offsets = [0, 96], sizes = [2, 32], strides = [1, 1]} : vector<2x128xf32> to vector<2x32xf32>
    %215 = arith.mulf %212, %175 : vector<2x32xf32>
    %216 = arith.mulf %211, %213 : vector<2x32xf32>
    %217 = arith.addf %215, %216 : vector<2x32xf32>
    %218 = math.tanh %217 : vector<2x32xf32>
    %219 = arith.mulf %214, %218 : vector<2x32xf32>
    %220 = tpu.concatenate %200, %219 in 1 : vector<2x32xf32>, vector<2x32xf32> -> vector<2x64xf32>
    %cst_36 = arith.constant dense<0.000000e+00> : vector<2x256xf32>
    %221 = tpu.matmul %220, %2, %cst_36 {dimension_numbers = #tpu.dot_dimension_numbers<[1], [0], [0], [1], [0, 0, 1, 1], [], []>} : vector<2x64xf32>, vector<64x256xf32>, vector<2x256xf32> -> vector<2x256xf32>
    %222 = vector.extract_strided_slice %221 {offsets = [0, 0], sizes = [2, 128], strides = [1, 1]} : vector<2x256xf32> to vector<2x128xf32>
    %223 = vector.extract_strided_slice %221 {offsets = [0, 128], sizes = [2, 128], strides = [1, 1]} : vector<2x256xf32> to vector<2x128xf32>
    %224 = vector.extract_strided_slice %8 {offsets = [10, 0], sizes = [2, 128], strides = [1, 1]} : vector<16x128xf32> to vector<2x128xf32>
    %225 = arith.addf %224, %222 : vector<2x128xf32>
    %226 = vector.broadcast %3 : vector<1x128xf32> to vector<2x128xf32>
    %227 = arith.addf %225, %226 : vector<2x128xf32>
    %228 = arith.negf %227 : vector<2x128xf32>
    %229 = math.exp %228 : vector<2x128xf32>
    %cst_37 = arith.constant 1.000000e+00 : f32
    %230 = vector.broadcast %cst_37 : f32 to vector<2x128xf32>
    %231 = arith.addf %230, %229 : vector<2x128xf32>
    %232 = arith.divf %230, %231 : vector<2x128xf32>
    %233 = math.tanh %227 : vector<2x128xf32>
    %234 = vector.extract_strided_slice %232 {offsets = [0, 0], sizes = [2, 32], strides = [1, 1]} : vector<2x128xf32> to vector<2x32xf32>
    %235 = vector.extract_strided_slice %232 {offsets = [0, 32], sizes = [2, 32], strides = [1, 1]} : vector<2x128xf32> to vector<2x32xf32>
    %236 = vector.extract_strided_slice %233 {offsets = [0, 64], sizes = [2, 32], strides = [1, 1]} : vector<2x128xf32> to vector<2x32xf32>
    %237 = vector.extract_strided_slice %232 {offsets = [0, 96], sizes = [2, 32], strides = [1, 1]} : vector<2x128xf32> to vector<2x32xf32>
    %238 = arith.mulf %235, %198 : vector<2x32xf32>
    %239 = arith.mulf %234, %236 : vector<2x32xf32>
    %240 = arith.addf %238, %239 : vector<2x32xf32>
    %241 = math.tanh %240 : vector<2x32xf32>
    %242 = arith.mulf %237, %241 : vector<2x32xf32>
    %cst_38 = arith.constant dense<0.000000e+00> : vector<2x128xf32>
    %243 = tpu.matmul %242, %4, %cst_38 {dimension_numbers = #tpu.dot_dimension_numbers<[1], [0], [0], [1], [0, 0, 1, 1], [], []>} : vector<2x32xf32>, vector<32x128xf32>, vector<2x128xf32> -> vector<2x128xf32>
    %244 = arith.addf %243, %223 : vector<2x128xf32>
    %245 = vector.broadcast %5 : vector<1x128xf32> to vector<2x128xf32>
    %246 = arith.addf %244, %245 : vector<2x128xf32>
    %247 = arith.negf %246 : vector<2x128xf32>
    %248 = math.exp %247 : vector<2x128xf32>
    %cst_39 = arith.constant 1.000000e+00 : f32
    %249 = vector.broadcast %cst_39 : f32 to vector<2x128xf32>
    %250 = arith.addf %249, %248 : vector<2x128xf32>
    %251 = arith.divf %249, %250 : vector<2x128xf32>
    %252 = math.tanh %246 : vector<2x128xf32>
    %253 = vector.extract_strided_slice %251 {offsets = [0, 0], sizes = [2, 32], strides = [1, 1]} : vector<2x128xf32> to vector<2x32xf32>
    %254 = vector.extract_strided_slice %251 {offsets = [0, 32], sizes = [2, 32], strides = [1, 1]} : vector<2x128xf32> to vector<2x32xf32>
    %255 = vector.extract_strided_slice %252 {offsets = [0, 64], sizes = [2, 32], strides = [1, 1]} : vector<2x128xf32> to vector<2x32xf32>
    %256 = vector.extract_strided_slice %251 {offsets = [0, 96], sizes = [2, 32], strides = [1, 1]} : vector<2x128xf32> to vector<2x32xf32>
    %257 = arith.mulf %254, %217 : vector<2x32xf32>
    %258 = arith.mulf %253, %255 : vector<2x32xf32>
    %259 = arith.addf %257, %258 : vector<2x32xf32>
    %260 = math.tanh %259 : vector<2x32xf32>
    %261 = arith.mulf %256, %260 : vector<2x32xf32>
    %262 = tpu.concatenate %242, %261 in 1 : vector<2x32xf32>, vector<2x32xf32> -> vector<2x64xf32>
    %cst_40 = arith.constant dense<0.000000e+00> : vector<2x256xf32>
    %263 = tpu.matmul %262, %2, %cst_40 {dimension_numbers = #tpu.dot_dimension_numbers<[1], [0], [0], [1], [0, 0, 1, 1], [], []>} : vector<2x64xf32>, vector<64x256xf32>, vector<2x256xf32> -> vector<2x256xf32>
    %264 = vector.extract_strided_slice %263 {offsets = [0, 0], sizes = [2, 128], strides = [1, 1]} : vector<2x256xf32> to vector<2x128xf32>
    %265 = vector.extract_strided_slice %263 {offsets = [0, 128], sizes = [2, 128], strides = [1, 1]} : vector<2x256xf32> to vector<2x128xf32>
    %266 = vector.extract_strided_slice %8 {offsets = [12, 0], sizes = [2, 128], strides = [1, 1]} : vector<16x128xf32> to vector<2x128xf32>
    %267 = arith.addf %266, %264 : vector<2x128xf32>
    %268 = vector.broadcast %3 : vector<1x128xf32> to vector<2x128xf32>
    %269 = arith.addf %267, %268 : vector<2x128xf32>
    %270 = arith.negf %269 : vector<2x128xf32>
    %271 = math.exp %270 : vector<2x128xf32>
    %cst_41 = arith.constant 1.000000e+00 : f32
    %272 = vector.broadcast %cst_41 : f32 to vector<2x128xf32>
    %273 = arith.addf %272, %271 : vector<2x128xf32>
    %274 = arith.divf %272, %273 : vector<2x128xf32>
    %275 = math.tanh %269 : vector<2x128xf32>
    %276 = vector.extract_strided_slice %274 {offsets = [0, 0], sizes = [2, 32], strides = [1, 1]} : vector<2x128xf32> to vector<2x32xf32>
    %277 = vector.extract_strided_slice %274 {offsets = [0, 32], sizes = [2, 32], strides = [1, 1]} : vector<2x128xf32> to vector<2x32xf32>
    %278 = vector.extract_strided_slice %275 {offsets = [0, 64], sizes = [2, 32], strides = [1, 1]} : vector<2x128xf32> to vector<2x32xf32>
    %279 = vector.extract_strided_slice %274 {offsets = [0, 96], sizes = [2, 32], strides = [1, 1]} : vector<2x128xf32> to vector<2x32xf32>
    %280 = arith.mulf %277, %240 : vector<2x32xf32>
    %281 = arith.mulf %276, %278 : vector<2x32xf32>
    %282 = arith.addf %280, %281 : vector<2x32xf32>
    %283 = math.tanh %282 : vector<2x32xf32>
    %284 = arith.mulf %279, %283 : vector<2x32xf32>
    %cst_42 = arith.constant dense<0.000000e+00> : vector<2x128xf32>
    %285 = tpu.matmul %284, %4, %cst_42 {dimension_numbers = #tpu.dot_dimension_numbers<[1], [0], [0], [1], [0, 0, 1, 1], [], []>} : vector<2x32xf32>, vector<32x128xf32>, vector<2x128xf32> -> vector<2x128xf32>
    %286 = arith.addf %285, %265 : vector<2x128xf32>
    %287 = vector.broadcast %5 : vector<1x128xf32> to vector<2x128xf32>
    %288 = arith.addf %286, %287 : vector<2x128xf32>
    %289 = arith.negf %288 : vector<2x128xf32>
    %290 = math.exp %289 : vector<2x128xf32>
    %cst_43 = arith.constant 1.000000e+00 : f32
    %291 = vector.broadcast %cst_43 : f32 to vector<2x128xf32>
    %292 = arith.addf %291, %290 : vector<2x128xf32>
    %293 = arith.divf %291, %292 : vector<2x128xf32>
    %294 = math.tanh %288 : vector<2x128xf32>
    %295 = vector.extract_strided_slice %293 {offsets = [0, 0], sizes = [2, 32], strides = [1, 1]} : vector<2x128xf32> to vector<2x32xf32>
    %296 = vector.extract_strided_slice %293 {offsets = [0, 32], sizes = [2, 32], strides = [1, 1]} : vector<2x128xf32> to vector<2x32xf32>
    %297 = vector.extract_strided_slice %294 {offsets = [0, 64], sizes = [2, 32], strides = [1, 1]} : vector<2x128xf32> to vector<2x32xf32>
    %298 = vector.extract_strided_slice %293 {offsets = [0, 96], sizes = [2, 32], strides = [1, 1]} : vector<2x128xf32> to vector<2x32xf32>
    %299 = arith.mulf %296, %259 : vector<2x32xf32>
    %300 = arith.mulf %295, %297 : vector<2x32xf32>
    %301 = arith.addf %299, %300 : vector<2x32xf32>
    %302 = math.tanh %301 : vector<2x32xf32>
    %303 = arith.mulf %298, %302 : vector<2x32xf32>
    %304 = tpu.concatenate %284, %303 in 1 : vector<2x32xf32>, vector<2x32xf32> -> vector<2x64xf32>
    %cst_44 = arith.constant dense<0.000000e+00> : vector<2x256xf32>
    %305 = tpu.matmul %304, %2, %cst_44 {dimension_numbers = #tpu.dot_dimension_numbers<[1], [0], [0], [1], [0, 0, 1, 1], [], []>} : vector<2x64xf32>, vector<64x256xf32>, vector<2x256xf32> -> vector<2x256xf32>
    %306 = vector.extract_strided_slice %305 {offsets = [0, 0], sizes = [2, 128], strides = [1, 1]} : vector<2x256xf32> to vector<2x128xf32>
    %307 = vector.extract_strided_slice %305 {offsets = [0, 128], sizes = [2, 128], strides = [1, 1]} : vector<2x256xf32> to vector<2x128xf32>
    %308 = vector.extract_strided_slice %8 {offsets = [14, 0], sizes = [2, 128], strides = [1, 1]} : vector<16x128xf32> to vector<2x128xf32>
    %309 = arith.addf %308, %306 : vector<2x128xf32>
    %310 = vector.broadcast %3 : vector<1x128xf32> to vector<2x128xf32>
    %311 = arith.addf %309, %310 : vector<2x128xf32>
    %312 = arith.negf %311 : vector<2x128xf32>
    %313 = math.exp %312 : vector<2x128xf32>
    %cst_45 = arith.constant 1.000000e+00 : f32
    %314 = vector.broadcast %cst_45 : f32 to vector<2x128xf32>
    %315 = arith.addf %314, %313 : vector<2x128xf32>
    %316 = arith.divf %314, %315 : vector<2x128xf32>
    %317 = math.tanh %311 : vector<2x128xf32>
    %318 = vector.extract_strided_slice %316 {offsets = [0, 0], sizes = [2, 32], strides = [1, 1]} : vector<2x128xf32> to vector<2x32xf32>
    %319 = vector.extract_strided_slice %316 {offsets = [0, 32], sizes = [2, 32], strides = [1, 1]} : vector<2x128xf32> to vector<2x32xf32>
    %320 = vector.extract_strided_slice %317 {offsets = [0, 64], sizes = [2, 32], strides = [1, 1]} : vector<2x128xf32> to vector<2x32xf32>
    %321 = vector.extract_strided_slice %316 {offsets = [0, 96], sizes = [2, 32], strides = [1, 1]} : vector<2x128xf32> to vector<2x32xf32>
    %322 = arith.mulf %319, %282 : vector<2x32xf32>
    %323 = arith.mulf %318, %320 : vector<2x32xf32>
    %324 = arith.addf %322, %323 : vector<2x32xf32>
    %325 = math.tanh %324 : vector<2x32xf32>
    %326 = arith.mulf %321, %325 : vector<2x32xf32>
    %cst_46 = arith.constant dense<0.000000e+00> : vector<2x128xf32>
    %327 = tpu.matmul %326, %4, %cst_46 {dimension_numbers = #tpu.dot_dimension_numbers<[1], [0], [0], [1], [0, 0, 1, 1], [], []>} : vector<2x32xf32>, vector<32x128xf32>, vector<2x128xf32> -> vector<2x128xf32>
    %328 = arith.addf %327, %307 : vector<2x128xf32>
    %329 = vector.broadcast %5 : vector<1x128xf32> to vector<2x128xf32>
    %330 = arith.addf %328, %329 : vector<2x128xf32>
    %331 = arith.negf %330 : vector<2x128xf32>
    %332 = math.exp %331 : vector<2x128xf32>
    %cst_47 = arith.constant 1.000000e+00 : f32
    %333 = vector.broadcast %cst_47 : f32 to vector<2x128xf32>
    %334 = arith.addf %333, %332 : vector<2x128xf32>
    %335 = arith.divf %333, %334 : vector<2x128xf32>
    %336 = math.tanh %330 : vector<2x128xf32>
    %337 = vector.extract_strided_slice %335 {offsets = [0, 0], sizes = [2, 32], strides = [1, 1]} : vector<2x128xf32> to vector<2x32xf32>
    %338 = vector.extract_strided_slice %335 {offsets = [0, 32], sizes = [2, 32], strides = [1, 1]} : vector<2x128xf32> to vector<2x32xf32>
    %339 = vector.extract_strided_slice %336 {offsets = [0, 64], sizes = [2, 32], strides = [1, 1]} : vector<2x128xf32> to vector<2x32xf32>
    %340 = vector.extract_strided_slice %335 {offsets = [0, 96], sizes = [2, 32], strides = [1, 1]} : vector<2x128xf32> to vector<2x32xf32>
    %341 = arith.mulf %338, %301 : vector<2x32xf32>
    %342 = arith.mulf %337, %339 : vector<2x32xf32>
    %343 = arith.addf %341, %342 : vector<2x32xf32>
    %344 = math.tanh %343 : vector<2x32xf32>
    %345 = arith.mulf %340, %344 : vector<2x32xf32>
    %cst_48 = arith.constant dense<0.000000e+00> : vector<2x4xf32>
    %346 = tpu.matmul %345, %6, %cst_48 {dimension_numbers = #tpu.dot_dimension_numbers<[1], [0], [0], [1], [0, 0, 1, 1], [], []>} : vector<2x32xf32>, vector<32x4xf32>, vector<2x4xf32> -> vector<2x4xf32>
    %347 = vector.broadcast %7 : vector<1x4xf32> to vector<2x4xf32>
    %348 = arith.addf %346, %347 : vector<2x4xf32>
    %c0_49 = arith.constant 0 : index
    %c0_50 = arith.constant 0 : index
    %349 = vector.load %arg8[%c0_49, %c0_50] : memref<2x4xf32, #tpu.memory_space<vmem>>, vector<2x4xf32>
    tpu.vector_store %arg8[%c0_49, %c0_50], %348 {strides = array<i32>} : memref<2x4xf32, #tpu.memory_space<vmem>>, vector<2x4xf32>,
    return
  }
}

</mosaic_0001>

<llo_original>
// kernel: net_forward.1
$region0: #{net_forward.1}
  #allocation0 [shape = 'u32[]', space=smem, size = 0x4, offset = 0x4, fixed_abs, tag = 'smem constant byte address 0x4 - core index']
  #allocation1 [shape = 'u32[72,128]{1,0:T(1,128)}', space=vmem, size = 0x9000, scoped, tag = 'internal scratch']
  %s0 = inlined_call_operand.vmem [shape: f32[16,16], index: 0, kind: input, shape index: {}]
  %s1 = inlined_call_operand.vmem [shape: f32[16,128], index: 1, kind: input, shape index: {}]
  %s2 = inlined_call_operand.vmem [shape: f32[64,256], index: 2, kind: input, shape index: {}]
  %s3 = inlined_call_operand.vmem [shape: f32[1,128], index: 3, kind: input, shape index: {}]
  %s4 = inlined_call_operand.vmem [shape: f32[32,128], index: 4, kind: input, shape index: {}]
  %s5 = inlined_call_operand.vmem [shape: f32[1,128], index: 5, kind: input, shape index: {}]
  %s6 = inlined_call_operand.vmem [shape: f32[32,4], index: 6, kind: input, shape index: {}]
  %s7 = inlined_call_operand.vmem [shape: f32[1,4], index: 7, kind: input, shape index: {}]
  %s8 = inlined_call_operand.hbm [shape: f32[2,4], index: 8, kind: output, shape index: {}]
  %s9 = sld [smem:[#allocation0]]
  $region42: #{net_forward.1} parent=0
    _
  %s11 = ssub.s32 1, %s9
  %s12 = scalar_select 0, %s11, %s9
  $region1: #{net_forward.1} parent=0
    #allocation2 [shape = 'u8[1024]{0}', space=vmem, size = 0x400, scoped, tag = 'output window, operand 0, single buffered']
    #allocation3 [shape = 's32[1]{0}', space=sflag, size = 0x4, scoped, tag = 'scoped memory for net_forward.1']
    %13 = vsyncpa [#allocation3], 0
    // Predicated region
    $region2: #{net_forward.1} parent=1 // pred_check
      _
    $region3: #{net_forward.1} parent=1 // pred_check_branch
      %15 = sbr.rel (0) target = $region5
    $region4: #{net_forward.1} parent=1 // pred_region
      _
    $region5: #{net_forward.1} parent=1 // pred_fallthru
      _
    // Predicated region
    $region6: #{net_forward.1} parent=1 // pred_check
      _
    $region7: #{net_forward.1} parent=1 // pred_check_branch
      %17 = sbr.rel (0) target = $region9
    $region8: #{net_forward.1} parent=1 // pred_region
      _
    $region9: #{net_forward.1} parent=1 // pred_fallthru
      _
    // Predicated region
    $region10: #{net_forward.1} parent=1 // pred_check
      _
    $region11: #{net_forward.1} parent=1 // pred_check_branch
      %19 = sbr.rel (0) target = $region13
    $region12: #{net_forward.1} parent=1 // pred_region
      _
    $region13: #{net_forward.1} parent=1 // pred_fallthru
      _
    // Predicated region
    $region14: #{net_forward.1} parent=1 // pred_check
      _
    $region15: #{net_forward.1} parent=1 // pred_check_branch
      %21 = sbr.rel (0) target = $region17
    $region16: #{net_forward.1} parent=1 // pred_region
      _
    $region17: #{net_forward.1} parent=1 // pred_fallthru
      _
    // Predicated region
    $region18: #{net_forward.1} parent=1 // pred_check
      _
    $region19: #{net_forward.1} parent=1 // pred_check_branch
      %23 = sbr.rel (0) target = $region21
    $region20: #{net_forward.1} parent=1 // pred_region
      _
    $region21: #{net_forward.1} parent=1 // pred_fallthru
      _
    // Predicated region
    $region22: #{net_forward.1} parent=1 // pred_check
      _
    $region23: #{net_forward.1} parent=1 // pred_check_branch
      %25 = sbr.rel (0) target = $region25
    $region24: #{net_forward.1} parent=1 // pred_region
      _
    $region25: #{net_forward.1} parent=1 // pred_fallthru
      _
    // Predicated region
    $region26: #{net_forward.1} parent=1 // pred_check
      _
    $region27: #{net_forward.1} parent=1 // pred_check_branch
      %27 = sbr.rel (0) target = $region29
    $region28: #{net_forward.1} parent=1 // pred_region
      _
    $region29: #{net_forward.1} parent=1 // pred_fallthru
      _
    // Predicated region
    $region30: #{net_forward.1} parent=1 // pred_check
      _
    $region31: #{net_forward.1} parent=1 // pred_check_branch
      %29 = sbr.rel (0) target = $region33
    $region32: #{net_forward.1} parent=1 // pred_region
      _
    $region33: #{net_forward.1} parent=1 // pred_fallthru
      _
    %v30 = vld [vmem:[%s0] sm:$0xff]
    %v31 = vld [vmem:[%s0 + $0x8] sm:$0xff]
    %v32 = vld [vmem:[%s1] sm:$0xff]
    %v33 = vld [vmem:[%s1 + $0x8] sm:$0xff]
    %v34 = vld [vmem:[%s2] sm:$0xff]
    %v35 = vld [vmem:[%s2 + $0x8] sm:$0xff]
    %v36 = vld [vmem:[%s2 + $0x10] sm:$0xff]
    %v37 = vld [vmem:[%s2 + $0x18] sm:$0xff]
    %v38 = vld [vmem:[%s2 + $0x20] sm:$0xff]
    %v39 = vld [vmem:[%s2 + $0x28] sm:$0xff]
    %v40 = vld [vmem:[%s2 + $0x30] sm:$0xff]
    %v41 = vld [vmem:[%s2 + $0x38] sm:$0xff]
    %v42 = vld [vmem:[%s2 + $0x40] sm:$0xff]
    %v43 = vld [vmem:[%s2 + $0x48] sm:$0xff]
    %v44 = vld [vmem:[%s2 + $0x50] sm:$0xff]
    %v45 = vld [vmem:[%s2 + $0x58] sm:$0xff]
    %v46 = vld [vmem:[%s2 + $0x60] sm:$0xff]
    %v47 = vld [vmem:[%s2 + $0x68] sm:$0xff]
    %v48 = vld [vmem:[%s2 + $0x70] sm:$0xff]
    %v49 = vld [vmem:[%s2 + $0x78] sm:$0xff]
    %v50 = vld [vmem:[%s3] sm:$0x1]
    %v51 = vld [vmem:[%s4] sm:$0xff]
    %v52 = vld [vmem:[%s4 + $0x8] sm:$0xff]
    %v53 = vld [vmem:[%s4 + $0x10] sm:$0xff]
    %v54 = vld [vmem:[%s4 + $0x18] sm:$0xff]
    %v55 = vld [vmem:[%s5] sm:$0x1]
    %v56 = vld [vmem:[%s6] sm:$0xff]
    %v57 = vld [vmem:[%s6 + $0x8] sm:$0xff]
    %v58 = vld [vmem:[%s6 + $0x10] sm:$0xff]
    %v59 = vld [vmem:[%s6 + $0x18] sm:$0xff]
    %v60 = vld [vmem:[%s7] sm:$0x1]
    %vm61 = vcmask 130048
    %v63 = vsel %vm61, %v30, 0
    %v66 = vsel %vm61, %v31, 0
    %68 = vmatpush.msra.mxu0 0.0
    %69 = vmatpush.msra.mxu0 0.0
    %70 = vmatpush.msra.mxu0 0.0
    %71 = vmatpush.msra.mxu0 0.0
    %72 = vmatpush.msra.mxu0 0.0
    %73 = vmatpush.msra.mxu0 0.0
    %74 = vmatpush.msra.mxu0 0.0
    %75 = vmatpush.msra.mxu0 0.0
    %76 = vmatpush.msra.mxu0 0.0
    %77 = vmatpush.msra.mxu0 0.0
    %78 = vmatpush.msra.mxu0 0.0
    %79 = vmatpush.msra.mxu0 0.0
    %80 = vmatpush.msra.mxu0 0.0
    %81 = vmatpush.msra.mxu0 0.0
    %82 = vmatpush.msra.mxu0 %v33
    %83 = vmatpush.msra.mxu0 %v32
    %84 = vmatmul.f32.gmra.mxu0 %v63
    %v85 = vpop.f32.mrf.mxu0
    %v86 = vadd.f32 0.0, %v85
    %87 = vmatmul.f32.gmra.mxu0 %v66
    %v88 = vpop.f32.mrf.mxu0
    %v89 = vadd.f32 0.0, %v88
    %90 = vdwg.mxu0
    %vm91 = vcmask 523264
    %v93 = vsel %vm91, 0.0, 0
    %95 = vmatpush.msra.mxu0 0.0
    %96 = vmatpush.msra.mxu0 0.0
    %97 = vmatpush.msra.mxu0 0.0
    %98 = vmatpush.msra.mxu0 0.0
    %99 = vmatpush.msra.mxu0 0.0
    %100 = vmatpush.msra.mxu0 0.0
    %101 = vmatpush.msra.mxu0 0.0
    %102 = vmatpush.msra.mxu0 0.0
    %103 = vmatpush.msra.mxu0 %v48
    %104 = vmatpush.msra.mxu0 %v46
    %105 = vmatpush.msra.mxu0 %v44
    %106 = vmatpush.msra.mxu0 %v42
    %107 = vmatpush.msra.mxu0 %v40
    %108 = vmatpush.msra.mxu0 %v38
    %109 = vmatpush.msra.mxu0 %v36
    %110 = vmatpush.msra.mxu0 %v34
    %111 = vmatmul.f32.gmra.mxu0 %v93
    %v112 = vpop.f32.mrf.mxu0
    %v113 = vadd.f32 0.0, %v112
    %114 = vdwg.mxu0
    %115 = vmatpush.msra.mxu0 0.0
    %116 = vmatpush.msra.mxu0 0.0
    %117 = vmatpush.msra.mxu0 0.0
    %118 = vmatpush.msra.mxu0 0.0
    %119 = vmatpush.msra.mxu0 0.0
    %120 = vmatpush.msra.mxu0 0.0
    %121 = vmatpush.msra.mxu0 0.0
    %122 = vmatpush.msra.mxu0 0.0
    %123 = vmatpush.msra.mxu0 %v49
    %124 = vmatpush.msra.mxu0 %v47
    %125 = vmatpush.msra.mxu0 %v45
    %126 = vmatpush.msra.mxu0 %v43
    %127 = vmatpush.msra.mxu0 %v41
    %128 = vmatpush.msra.mxu0 %v39
    %129 = vmatpush.msra.mxu0 %v37
    %130 = vmatpush.msra.mxu0 %v35
    %131 = vmatmul.f32.gmra.mxu0 %v93
    %v132 = vpop.f32.mrf.mxu0
    %v133 = vadd.f32 0.0, %v132
    %134 = vdwg.mxu0
    %v135 = vadd.f32 %v86, %v113
    %v137 = vperm.slane %v50, 0
    %v139 = vadd.f32 %v135, %v137
    %v140 = vxor.u32 %v139, 2147483648
    %v141 = vmul.f32 %v140, 1.442695
    %v142 = vpow.pop %v141
    %v143 = vadd.f32 %v142, 1.0
    %v144 = vrcp.pop %v143
    %v145 = vmul.f32 %v143, %v144
    %v146 = vsub.f32 1.0, %v145
    %v147 = vmul.f32 %v144, %v146
    %v148 = vadd.f32 %v144, %v147
    %vm149 = vweird.f32 %v143
    %vm150 = vweird.f32 %v144
    %vm151 = vmor %vm149, %vm150
    %v152 = vsel %vm151, %v144, %v148
    %v153 = vand.u32 2147483647, %v143
    %vm154 = vcmp.eq.f32.partialorder %v153, 8.507059e+37
    %v155 = vand.u32 %v143, 2147483648
    %v156 = vor.u32 1.1754944e-38, %v155
    %v157 = vsel %vm154, %v156, %v152
    %v158 = vmul.f32 1.0, %v157
    %v159 = vtanh.pop %v139
    %v160 = vmul.f32 %v158, 0.0
    %162 = vrot.lane.b32.xlu0 %v159, 64
    %v163 = vpop.permute.xlu0 %162
    %v165 = vmul.f32 %v158, %v163
    %167 = vrot.lane.b32.xlu0 %v165, 32
    %v168 = vpop.permute.xlu0 %167
    %v170 = vadd.f32 %v160, %v168
    %v171 = vtanh.pop %v170
    %173 = vrot.lane.b32.xlu0 %v171, 64
    %v174 = vpop.permute.xlu0 %173
    %v176 = vmul.f32 %v158, %v174
    %178 = vrot.lane.b32.xlu0 %v176, 32
    %v179 = vpop.permute.xlu0 %178
    %vm180 = vcmask 261120
    %v181 = vsel %vm180, %v179, 0
    %183 = vmatpush.msra.mxu0 0.0
    %184 = vmatpush.msra.mxu0 0.0
    %185 = vmatpush.msra.mxu0 0.0
    %186 = vmatpush.msra.mxu0 0.0
    %187 = vmatpush.msra.mxu0 0.0
    %188 = vmatpush.msra.mxu0 0.0
    %189 = vmatpush.msra.mxu0 0.0
    %190 = vmatpush.msra.mxu0 0.0
    %191 = vmatpush.msra.mxu0 0.0
    %192 = vmatpush.msra.mxu0 0.0
    %193 = vmatpush.msra.mxu0 0.0
    %194 = vmatpush.msra.mxu0 0.0
    %195 = vmatpush.msra.mxu0 %v54
    %196 = vmatpush.msra.mxu0 %v53
    %197 = vmatpush.msra.mxu0 %v52
    %198 = vmatpush.msra.mxu0 %v51
    %199 = vmatmul.f32.gmra.mxu0 %v181
    %v200 = vpop.f32.mrf.mxu0
    %v201 = vadd.f32 %v133, %v200
    %202 = vdwg.mxu0
    %v204 = vperm.slane %v55, 0
    %v206 = vadd.f32 %v201, %v204
    %v207 = vxor.u32 %v206, 2147483648
    %v208 = vmul.f32 %v207, 1.442695
    %v209 = vpow.pop %v208
    %v210 = vadd.f32 %v209, 1.0
    %v211 = vrcp.pop %v210
    %v212 = vmul.f32 %v210, %v211
    %v213 = vsub.f32 1.0, %v212
    %v214 = vmul.f32 %v211, %v213
    %v215 = vadd.f32 %v211, %v214
    %vm216 = vweird.f32 %v210
    %vm217 = vweird.f32 %v211
    %vm218 = vmor %vm216, %vm217
    %v219 = vsel %vm218, %v211, %v215
    %v220 = vand.u32 2147483647, %v210
    %vm221 = vcmp.eq.f32.partialorder %v220, 8.507059e+37
    %v222 = vand.u32 %v210, 2147483648
    %v223 = vor.u32 1.1754944e-38, %v222
    %v224 = vsel %vm221, %v223, %v219
    %v225 = vmul.f32 1.0, %v224
    %v226 = vtanh.pop %v206
    %v227 = vmul.f32 %v225, 0.0
    %229 = vrot.lane.b32.xlu0 %v226, 64
    %v230 = vpop.permute.xlu0 %229
    %v232 = vmul.f32 %v225, %v230
    %234 = vrot.lane.b32.xlu0 %v232, 32
    %v235 = vpop.permute.xlu0 %234
    %v237 = vadd.f32 %v227, %v235
    %v238 = vtanh.pop %v237
    %240 = vrot.lane.b32.xlu0 %v238, 64
    %v241 = vpop.permute.xlu0 %240
    %v243 = vmul.f32 %v225, %v241
    %246 = vrot.lane.b32.xlu0 %v243, 64
    %v247 = vpop.permute.xlu0 %246
    %v249 = vsel %vm180, %v179, %v247
    %v251 = vsel %vm91, %v249, 0
    %253 = vmatpush.msra.mxu0 0.0
    %254 = vmatpush.msra.mxu0 0.0
    %255 = vmatpush.msra.mxu0 0.0
    %256 = vmatpush.msra.mxu0 0.0
    %257 = vmatpush.msra.mxu0 0.0
    %258 = vmatpush.msra.mxu0 0.0
    %259 = vmatpush.msra.mxu0 0.0
    %260 = vmatpush.msra.mxu0 0.0
    %261 = vmatpush.msra.mxu0 %v48
    %262 = vmatpush.msra.mxu0 %v46
    %263 = vmatpush.msra.mxu0 %v44
    %264 = vmatpush.msra.mxu0 %v42
    %265 = vmatpush.msra.mxu0 %v40
    %266 = vmatpush.msra.mxu0 %v38
    %267 = vmatpush.msra.mxu0 %v36
    %268 = vmatpush.msra.mxu0 %v34
    %269 = vmatmul.f32.gmra.mxu0 %v251
    %v270 = vpop.f32.mrf.mxu0
    %v271 = vadd.f32 0.0, %v270
    %272 = vdwg.mxu0
    %273 = vmatpush.msra.mxu0 0.0
    %274 = vmatpush.msra.mxu0 0.0
    %275 = vmatpush.msra.mxu0 0.0
    %276 = vmatpush.msra.mxu0 0.0
    %277 = vmatpush.msra.mxu0 0.0
    %278 = vmatpush.msra.mxu0 0.0
    %279 = vmatpush.msra.mxu0 0.0
    %280 = vmatpush.msra.mxu0 0.0
    %281 = vmatpush.msra.mxu0 %v49
    %282 = vmatpush.msra.mxu0 %v47
    %283 = vmatpush.msra.mxu0 %v45
    %284 = vmatpush.msra.mxu0 %v43
    %285 = vmatpush.msra.mxu0 %v41
    %286 = vmatpush.msra.mxu0 %v39
    %287 = vmatpush.msra.mxu0 %v37
    %288 = vmatpush.msra.mxu0 %v35
    %289 = vmatmul.f32.gmra.mxu0 %v251
    %v290 = vpop.f32.mrf.mxu0
    %v291 = vadd.f32 0.0, %v290
    %292 = vdwg.mxu0
    %v294 = vrot.slane %v271, 6
    %v296 = vadd.f32 %v86, %v294
    %v297 = vadd.f32 %v296, %v137
    %v298 = vxor.u32 %v297, 2147483648
    %v299 = vmul.f32 %v298, 1.442695
    %v300 = vpow.pop %v299
    %v301 = vadd.f32 %v300, 1.0
    %v302 = vrcp.pop %v301
    %v303 = vmul.f32 %v301, %v302
    %v304 = vsub.f32 1.0, %v303
    %v305 = vmul.f32 %v302, %v304
    %v306 = vadd.f32 %v302, %v305
    %vm307 = vweird.f32 %v301
    %vm308 = vweird.f32 %v302
    %vm309 = vmor %vm307, %vm308
    %v310 = vsel %vm309, %v302, %v306
    %v311 = vand.u32 2147483647, %v301
    %vm312 = vcmp.eq.f32.partialorder %v311, 8.507059e+37
    %v313 = vand.u32 %v301, 2147483648
    %v314 = vor.u32 1.1754944e-38, %v313
    %v315 = vsel %vm312, %v314, %v310
    %v316 = vmul.f32 1.0, %v315
    %v317 = vtanh.pop %v297
    %v319 = vrot.slane %v170, 6
    %v321 = vmul.f32 %v316, %v319
    %323 = vrot.lane.b32.xlu0 %v317, 64
    %v324 = vpop.permute.xlu0 %323
    %v326 = vmul.f32 %v316, %v324
    %328 = vrot.lane.b32.xlu0 %v326, 32
    %v329 = vpop.permute.xlu0 %328
    %v331 = vadd.f32 %v321, %v329
    %v332 = vtanh.pop %v331
    %334 = vrot.lane.b32.xlu0 %v332, 64
    %v335 = vpop.permute.xlu0 %334
    %v337 = vmul.f32 %v316, %v335
    %v339 = vrot.slane %v337, 2
    %340 = vrot.lane.b32.xlu0 %v339, 32
    %v341 = vpop.permute.xlu0 %340
    %v342 = vsel %vm180, %v341, 0
    %344 = vmatpush.msra.mxu0 0.0
    %345 = vmatpush.msra.mxu0 0.0
    %346 = vmatpush.msra.mxu0 0.0
    %347 = vmatpush.msra.mxu0 0.0
    %348 = vmatpush.msra.mxu0 0.0
    %349 = vmatpush.msra.mxu0 0.0
    %350 = vmatpush.msra.mxu0 0.0
    %351 = vmatpush.msra.mxu0 0.0
    %352 = vmatpush.msra.mxu0 0.0
    %353 = vmatpush.msra.mxu0 0.0
    %354 = vmatpush.msra.mxu0 0.0
    %355 = vmatpush.msra.mxu0 0.0
    %356 = vmatpush.msra.mxu0 %v54
    %357 = vmatpush.msra.mxu0 %v53
    %358 = vmatpush.msra.mxu0 %v52
    %359 = vmatpush.msra.mxu0 %v51
    %360 = vmatmul.f32.gmra.mxu0 %v342
    %v361 = vpop.f32.mrf.mxu0
    %v362 = vadd.f32 %v291, %v361
    %363 = vdwg.mxu0
    %v364 = vadd.f32 %v362, %v204
    %v365 = vxor.u32 %v364, 2147483648
    %v366 = vmul.f32 %v365, 1.442695
    %v367 = vpow.pop %v366
    %v368 = vadd.f32 %v367, 1.0
    %v369 = vrcp.pop %v368
    %v370 = vmul.f32 %v368, %v369
    %v371 = vsub.f32 1.0, %v370
    %v372 = vmul.f32 %v369, %v371
    %v373 = vadd.f32 %v369, %v372
    %vm374 = vweird.f32 %v368
    %vm375 = vweird.f32 %v369
    %vm376 = vmor %vm374, %vm375
    %v377 = vsel %vm376, %v369, %v373
    %v378 = vand.u32 2147483647, %v368
    %vm379 = vcmp.eq.f32.partialorder %v378, 8.507059e+37
    %v380 = vand.u32 %v368, 2147483648
    %v381 = vor.u32 1.1754944e-38, %v380
    %v382 = vsel %vm379, %v381, %v377
    %v383 = vmul.f32 1.0, %v382
    %v384 = vtanh.pop %v364
    %v385 = vmul.f32 %v383, %v237
    %387 = vrot.lane.b32.xlu0 %v384, 64
    %v388 = vpop.permute.xlu0 %387
    %v390 = vmul.f32 %v383, %v388
    %392 = vrot.lane.b32.xlu0 %v390, 32
    %v393 = vpop.permute.xlu0 %392
    %v395 = vadd.f32 %v385, %v393
    %v396 = vtanh.pop %v395
    %398 = vrot.lane.b32.xlu0 %v396, 64
    %v399 = vpop.permute.xlu0 %398
    %v401 = vmul.f32 %v383, %v399
    %402 = vrot.lane.b32.xlu0 %v337, 32
    %v403 = vpop.permute.xlu0 %402
    %v406 = vrot.slane %v401, 6
    %407 = vrot.lane.b32.xlu0 %v406, 64
    %v408 = vpop.permute.xlu0 %407
    %v410 = vsel %vm180, %v403, %v408
    %v412 = vrot.slane %v410, 2
    %v413 = vsel %vm91, %v412, 0
    %415 = vmatpush.msra.mxu0 0.0
    %416 = vmatpush.msra.mxu0 0.0
    %417 = vmatpush.msra.mxu0 0.0
    %418 = vmatpush.msra.mxu0 0.0
    %419 = vmatpush.msra.mxu0 0.0
    %420 = vmatpush.msra.mxu0 0.0
    %421 = vmatpush.msra.mxu0 0.0
    %422 = vmatpush.msra.mxu0 0.0
    %423 = vmatpush.msra.mxu0 %v48
    %424 = vmatpush.msra.mxu0 %v46
    %425 = vmatpush.msra.mxu0 %v44
    %426 = vmatpush.msra.mxu0 %v42
    %427 = vmatpush.msra.mxu0 %v40
    %428 = vmatpush.msra.mxu0 %v38
    %429 = vmatpush.msra.mxu0 %v36
    %430 = vmatpush.msra.mxu0 %v34
    %431 = vmatmul.f32.gmra.mxu0 %v413
    %v432 = vpop.f32.mrf.mxu0
    %v433 = vadd.f32 0.0, %v432
    %434 = vdwg.mxu0
    %435 = vmatpush.msra.mxu0 0.0
    %436 = vmatpush.msra.mxu0 0.0
    %437 = vmatpush.msra.mxu0 0.0
    %438 = vmatpush.msra.mxu0 0.0
    %439 = vmatpush.msra.mxu0 0.0
    %440 = vmatpush.msra.mxu0 0.0
    %441 = vmatpush.msra.mxu0 0.0
    %442 = vmatpush.msra.mxu0 0.0
    %443 = vmatpush.msra.mxu0 %v49
    %444 = vmatpush.msra.mxu0 %v47
    %445 = vmatpush.msra.mxu0 %v45
    %446 = vmatpush.msra.mxu0 %v43
    %447 = vmatpush.msra.mxu0 %v41
    %448 = vmatpush.msra.mxu0 %v39
    %449 = vmatpush.msra.mxu0 %v37
    %450 = vmatpush.msra.mxu0 %v35
    %451 = vmatmul.f32.gmra.mxu0 %v413
    %v452 = vpop.f32.mrf.mxu0
    %v453 = vadd.f32 0.0, %v452
    %454 = vdwg.mxu0
    %v456 = vrot.slane %v433, 4
    %v458 = vadd.f32 %v86, %v456
    %v459 = vadd.f32 %v458, %v137
    %v460 = vxor.u32 %v459, 2147483648
    %v461 = vmul.f32 %v460, 1.442695
    %v462 = vpow.pop %v461
    %v463 = vadd.f32 %v462, 1.0
    %v464 = vrcp.pop %v463
    %v465 = vmul.f32 %v463, %v464
    %v466 = vsub.f32 1.0, %v465
    %v467 = vmul.f32 %v464, %v466
    %v468 = vadd.f32 %v464, %v467
    %vm469 = vweird.f32 %v463
    %vm470 = vweird.f32 %v464
    %vm471 = vmor %vm469, %vm470
    %v472 = vsel %vm471, %v464, %v468
    %v473 = vand.u32 2147483647, %v463
    %vm474 = vcmp.eq.f32.partialorder %v473, 8.507059e+37
    %v475 = vand.u32 %v463, 2147483648
    %v476 = vor.u32 1.1754944e-38, %v475
    %v477 = vsel %vm474, %v476, %v472
    %v478 = vmul.f32 1.0, %v477
    %v479 = vtanh.pop %v459
    %v481 = vrot.slane %v331, 6
    %v483 = vmul.f32 %v478, %v481
    %485 = vrot.lane.b32.xlu0 %v479, 64
    %v486 = vpop.permute.xlu0 %485
    %v488 = vmul.f32 %v478, %v486
    %490 = vrot.lane.b32.xlu0 %v488, 32
    %v491 = vpop.permute.xlu0 %490
    %v493 = vadd.f32 %v483, %v491
    %v494 = vtanh.pop %v493
    %496 = vrot.lane.b32.xlu0 %v494, 64
    %v497 = vpop.permute.xlu0 %496
    %v499 = vmul.f32 %v478, %v497
    %v501 = vrot.slane %v499, 4
    %502 = vrot.lane.b32.xlu0 %v501, 32
    %v503 = vpop.permute.xlu0 %502
    %v504 = vsel %vm180, %v503, 0
    %506 = vmatpush.msra.mxu0 0.0
    %507 = vmatpush.msra.mxu0 0.0
    %508 = vmatpush.msra.mxu0 0.0
    %509 = vmatpush.msra.mxu0 0.0
    %510 = vmatpush.msra.mxu0 0.0
    %511 = vmatpush.msra.mxu0 0.0
    %512 = vmatpush.msra.mxu0 0.0
    %513 = vmatpush.msra.mxu0 0.0
    %514 = vmatpush.msra.mxu0 0.0
    %515 = vmatpush.msra.mxu0 0.0
    %516 = vmatpush.msra.mxu0 0.0
    %517 = vmatpush.msra.mxu0 0.0
    %518 = vmatpush.msra.mxu0 %v54
    %519 = vmatpush.msra.mxu0 %v53
    %520 = vmatpush.msra.mxu0 %v52
    %521 = vmatpush.msra.mxu0 %v51
    %522 = vmatmul.f32.gmra.mxu0 %v504
    %v523 = vpop.f32.mrf.mxu0
    %v524 = vadd.f32 %v453, %v523
    %525 = vdwg.mxu0
    %v526 = vadd.f32 %v524, %v204
    %v527 = vxor.u32 %v526, 2147483648
    %v528 = vmul.f32 %v527, 1.442695
    %v529 = vpow.pop %v528
    %v530 = vadd.f32 %v529, 1.0
    %v531 = vrcp.pop %v530
    %v532 = vmul.f32 %v530, %v531
    %v533 = vsub.f32 1.0, %v532
    %v534 = vmul.f32 %v531, %v533
    %v535 = vadd.f32 %v531, %v534
    %vm536 = vweird.f32 %v530
    %vm537 = vweird.f32 %v531
    %vm538 = vmor %vm536, %vm537
    %v539 = vsel %vm538, %v531, %v535
    %v540 = vand.u32 2147483647, %v530
    %vm541 = vcmp.eq.f32.partialorder %v540, 8.507059e+37
    %v542 = vand.u32 %v530, 2147483648
    %v543 = vor.u32 1.1754944e-38, %v542
    %v544 = vsel %vm541, %v543, %v539
    %v545 = vmul.f32 1.0, %v544
    %v546 = vtanh.pop %v526
    %v547 = vmul.f32 %v545, %v395
    %549 = vrot.lane.b32.xlu0 %v546, 64
    %v550 = vpop.permute.xlu0 %549
    %v552 = vmul.f32 %v545, %v550
    %554 = vrot.lane.b32.xlu0 %v552, 32
    %v555 = vpop.permute.xlu0 %554
    %v557 = vadd.f32 %v547, %v555
    %v558 = vtanh.pop %v557
    %560 = vrot.lane.b32.xlu0 %v558, 64
    %v561 = vpop.permute.xlu0 %560
    %v563 = vmul.f32 %v545, %v561
    %564 = vrot.lane.b32.xlu0 %v499, 32
    %v565 = vpop.permute.xlu0 %564
    %v568 = vrot.slane %v563, 4
    %569 = vrot.lane.b32.xlu0 %v568, 64
    %v570 = vpop.permute.xlu0 %569
    %v572 = vsel %vm180, %v565, %v570
    %v574 = vrot.slane %v572, 4
    %v575 = vsel %vm91, %v574, 0
    %577 = vmatpush.msra.mxu0 0.0
    %578 = vmatpush.msra.mxu0 0.0
    %579 = vmatpush.msra.mxu0 0.0
    %580 = vmatpush.msra.mxu0 0.0
    %581 = vmatpush.msra.mxu0 0.0
    %582 = vmatpush.msra.mxu0 0.0
    %583 = vmatpush.msra.mxu0 0.0
    %584 = vmatpush.msra.mxu0 0.0
    %585 = vmatpush.msra.mxu0 %v48
    %586 = vmatpush.msra.mxu0 %v46
    %587 = vmatpush.msra.mxu0 %v44
    %588 = vmatpush.msra.mxu0 %v42
    %589 = vmatpush.msra.mxu0 %v40
    %590 = vmatpush.msra.mxu0 %v38
    %591 = vmatpush.msra.mxu0 %v36
    %592 = vmatpush.msra.mxu0 %v34
    %593 = vmatmul.f32.gmra.mxu0 %v575
    %v594 = vpop.f32.mrf.mxu0
    %v595 = vadd.f32 0.0, %v594
    %596 = vdwg.mxu0
    %597 = vmatpush.msra.mxu0 0.0
    %598 = vmatpush.msra.mxu0 0.0
    %599 = vmatpush.msra.mxu0 0.0
    %600 = vmatpush.msra.mxu0 0.0
    %601 = vmatpush.msra.mxu0 0.0
    %602 = vmatpush.msra.mxu0 0.0
    %603 = vmatpush.msra.mxu0 0.0
    %604 = vmatpush.msra.mxu0 0.0
    %605 = vmatpush.msra.mxu0 %v49
    %606 = vmatpush.msra.mxu0 %v47
    %607 = vmatpush.msra.mxu0 %v45
    %608 = vmatpush.msra.mxu0 %v43
    %609 = vmatpush.msra.mxu0 %v41
    %610 = vmatpush.msra.mxu0 %v39
    %611 = vmatpush.msra.mxu0 %v37
    %612 = vmatpush.msra.mxu0 %v35
    %613 = vmatmul.f32.gmra.mxu0 %v575
    %v614 = vpop.f32.mrf.mxu0
    %v615 = vadd.f32 0.0, %v614
    %616 = vdwg.mxu0
    %v618 = vrot.slane %v595, 2
    %v620 = vadd.f32 %v86, %v618
    %v621 = vadd.f32 %v620, %v137
    %v622 = vxor.u32 %v621, 2147483648
    %v623 = vmul.f32 %v622, 1.442695
    %v624 = vpow.pop %v623
    %v625 = vadd.f32 %v624, 1.0
    %v626 = vrcp.pop %v625
    %v627 = vmul.f32 %v625, %v626
    %v628 = vsub.f32 1.0, %v627
    %v629 = vmul.f32 %v626, %v628
    %v630 = vadd.f32 %v626, %v629
    %vm631 = vweird.f32 %v625
    %vm632 = vweird.f32 %v626
    %vm633 = vmor %vm631, %vm632
    %v634 = vsel %vm633, %v626, %v630
    %v635 = vand.u32 2147483647, %v625
    %vm636 = vcmp.eq.f32.partialorder %v635, 8.507059e+37
    %v637 = vand.u32 %v625, 2147483648
    %v638 = vor.u32 1.1754944e-38, %v637
    %v639 = vsel %vm636, %v638, %v634
    %v640 = vmul.f32 1.0, %v639
    %v641 = vtanh.pop %v621
    %v643 = vrot.slane %v493, 6
    %v645 = vmul.f32 %v640, %v643
    %647 = vrot.lane.b32.xlu0 %v641, 64
    %v648 = vpop.permute.xlu0 %647
    %v650 = vmul.f32 %v640, %v648
    %652 = vrot.lane.b32.xlu0 %v650, 32
    %v653 = vpop.permute.xlu0 %652
    %v655 = vadd.f32 %v645, %v653
    %v656 = vtanh.pop %v655
    %658 = vrot.lane.b32.xlu0 %v656, 64
    %v659 = vpop.permute.xlu0 %658
    %v661 = vmul.f32 %v640, %v659
    %v663 = vrot.slane %v661, 6
    %664 = vrot.lane.b32.xlu0 %v663, 32
    %v665 = vpop.permute.xlu0 %664
    %v666 = vsel %vm180, %v665, 0
    %668 = vmatpush.msra.mxu0 0.0
    %669 = vmatpush.msra.mxu0 0.0
    %670 = vmatpush.msra.mxu0 0.0
    %671 = vmatpush.msra.mxu0 0.0
    %672 = vmatpush.msra.mxu0 0.0
    %673 = vmatpush.msra.mxu0 0.0
    %674 = vmatpush.msra.mxu0 0.0
    %675 = vmatpush.msra.mxu0 0.0
    %676 = vmatpush.msra.mxu0 0.0
    %677 = vmatpush.msra.mxu0 0.0
    %678 = vmatpush.msra.mxu0 0.0
    %679 = vmatpush.msra.mxu0 0.0
    %680 = vmatpush.msra.mxu0 %v54
    %681 = vmatpush.msra.mxu0 %v53
    %682 = vmatpush.msra.mxu0 %v52
    %683 = vmatpush.msra.mxu0 %v51
    %684 = vmatmul.f32.gmra.mxu0 %v666
    %v685 = vpop.f32.mrf.mxu0
    %v686 = vadd.f32 %v615, %v685
    %687 = vdwg.mxu0
    %v688 = vadd.f32 %v686, %v204
    %v689 = vxor.u32 %v688, 2147483648
    %v690 = vmul.f32 %v689, 1.442695
    %v691 = vpow.pop %v690
    %v692 = vadd.f32 %v691, 1.0
    %v693 = vrcp.pop %v692
    %v694 = vmul.f32 %v692, %v693
    %v695 = vsub.f32 1.0, %v694
    %v696 = vmul.f32 %v693, %v695
    %v697 = vadd.f32 %v693, %v696
    %vm698 = vweird.f32 %v692
    %vm699 = vweird.f32 %v693
    %vm700 = vmor %vm698, %vm699
    %v701 = vsel %vm700, %v693, %v697
    %v702 = vand.u32 2147483647, %v692
    %vm703 = vcmp.eq.f32.partialorder %v702, 8.507059e+37
    %v704 = vand.u32 %v692, 2147483648
    %v705 = vor.u32 1.1754944e-38, %v704
    %v706 = vsel %vm703, %v705, %v701
    %v707 = vmul.f32 1.0, %v706
    %v708 = vtanh.pop %v688
    %v709 = vmul.f32 %v707, %v557
    %711 = vrot.lane.b32.xlu0 %v708, 64
    %v712 = vpop.permute.xlu0 %711
    %v714 = vmul.f32 %v707, %v712
    %716 = vrot.lane.b32.xlu0 %v714, 32
    %v717 = vpop.permute.xlu0 %716
    %v719 = vadd.f32 %v709, %v717
    %v720 = vtanh.pop %v719
    %722 = vrot.lane.b32.xlu0 %v720, 64
    %v723 = vpop.permute.xlu0 %722
    %v725 = vmul.f32 %v707, %v723
    %726 = vrot.lane.b32.xlu0 %v661, 32
    %v727 = vpop.permute.xlu0 %726
    %v730 = vrot.slane %v725, 2
    %731 = vrot.lane.b32.xlu0 %v730, 64
    %v732 = vpop.permute.xlu0 %731
    %v734 = vsel %vm180, %v727, %v732
    %v736 = vrot.slane %v734, 6
    %v737 = vsel %vm91, %v736, 0
    %739 = vmatpush.msra.mxu0 0.0
    %740 = vmatpush.msra.mxu0 0.0
    %741 = vmatpush.msra.mxu0 0.0
    %742 = vmatpush.msra.mxu0 0.0
    %743 = vmatpush.msra.mxu0 0.0
    %744 = vmatpush.msra.mxu0 0.0
    %745 = vmatpush.msra.mxu0 0.0
    %746 = vmatpush.msra.mxu0 0.0
    %747 = vmatpush.msra.mxu0 %v48
    %748 = vmatpush.msra.mxu0 %v46
    %749 = vmatpush.msra.mxu0 %v44
    %750 = vmatpush.msra.mxu0 %v42
    %751 = vmatpush.msra.mxu0 %v40
    %752 = vmatpush.msra.mxu0 %v38
    %753 = vmatpush.msra.mxu0 %v36
    %754 = vmatpush.msra.mxu0 %v34
    %755 = vmatmul.f32.gmra.mxu0 %v737
    %v756 = vpop.f32.mrf.mxu0
    %v757 = vadd.f32 0.0, %v756
    %758 = vdwg.mxu0
    %759 = vmatpush.msra.mxu0 0.0
    %760 = vmatpush.msra.mxu0 0.0
    %761 = vmatpush.msra.mxu0 0.0
    %762 = vmatpush.msra.mxu0 0.0
    %763 = vmatpush.msra.mxu0 0.0
    %764 = vmatpush.msra.mxu0 0.0
    %765 = vmatpush.msra.mxu0 0.0
    %766 = vmatpush.msra.mxu0 0.0
    %767 = vmatpush.msra.mxu0 %v49
    %768 = vmatpush.msra.mxu0 %v47
    %769 = vmatpush.msra.mxu0 %v45
    %770 = vmatpush.msra.mxu0 %v43
    %771 = vmatpush.msra.mxu0 %v41
    %772 = vmatpush.msra.mxu0 %v39
    %773 = vmatpush.msra.mxu0 %v37
    %774 = vmatpush.msra.mxu0 %v35
    %775 = vmatmul.f32.gmra.mxu0 %v737
    %v776 = vpop.f32.mrf.mxu0
    %v777 = vadd.f32 0.0, %v776
    %778 = vdwg.mxu0
    %v779 = vadd.f32 %v89, %v757
    %v780 = vadd.f32 %v779, %v137
    %v781 = vxor.u32 %v780, 2147483648
    %v782 = vmul.f32 %v781, 1.442695
    %v783 = vpow.pop %v782
    %v784 = vadd.f32 %v783, 1.0
    %v785 = vrcp.pop %v784
    %v786 = vmul.f32 %v784, %v785
    %v787 = vsub.f32 1.0, %v786
    %v788 = vmul.f32 %v785, %v787
    %v789 = vadd.f32 %v785, %v788
    %vm790 = vweird.f32 %v784
    %vm791 = vweird.f32 %v785
    %vm792 = vmor %vm790, %vm791
    %v793 = vsel %vm792, %v785, %v789
    %v794 = vand.u32 2147483647, %v784
    %vm795 = vcmp.eq.f32.partialorder %v794, 8.507059e+37
    %v796 = vand.u32 %v784, 2147483648
    %v797 = vor.u32 1.1754944e-38, %v796
    %v798 = vsel %vm795, %v797, %v793
    %v799 = vmul.f32 1.0, %v798
    %v800 = vtanh.pop %v780
    %v802 = vrot.slane %v655, 6
    %v804 = vmul.f32 %v799, %v802
    %806 = vrot.lane.b32.xlu0 %v800, 64
    %v807 = vpop.permute.xlu0 %806
    %v809 = vmul.f32 %v799, %v807
    %811 = vrot.lane.b32.xlu0 %v809, 32
    %v812 = vpop.permute.xlu0 %811
    %v814 = vadd.f32 %v804, %v812
    %v815 = vtanh.pop %v814
    %817 = vrot.lane.b32.xlu0 %v815, 64
    %v818 = vpop.permute.xlu0 %817
    %v820 = vmul.f32 %v799, %v818
    %822 = vrot.lane.b32.xlu0 %v820, 32
    %v823 = vpop.permute.xlu0 %822
    %v824 = vsel %vm180, %v823, 0
    %826 = vmatpush.msra.mxu0 0.0
    %827 = vmatpush.msra.mxu0 0.0
    %828 = vmatpush.msra.mxu0 0.0
    %829 = vmatpush.msra.mxu0 0.0
    %830 = vmatpush.msra.mxu0 0.0
    %831 = vmatpush.msra.mxu0 0.0
    %832 = vmatpush.msra.mxu0 0.0
    %833 = vmatpush.msra.mxu0 0.0
    %834 = vmatpush.msra.mxu0 0.0
    %835 = vmatpush.msra.mxu0 0.0
    %836 = vmatpush.msra.mxu0 0.0
    %837 = vmatpush.msra.mxu0 0.0
    %838 = vmatpush.msra.mxu0 %v54
    %839 = vmatpush.msra.mxu0 %v53
    %840 = vmatpush.msra.mxu0 %v52
    %841 = vmatpush.msra.mxu0 %v51
    %842 = vmatmul.f32.gmra.mxu0 %v824
    %v843 = vpop.f32.mrf.mxu0
    %v844 = vadd.f32 %v777, %v843
    %845 = vdwg.mxu0
    %v846 = vadd.f32 %v844, %v204
    %v847 = vxor.u32 %v846, 2147483648
    %v848 = vmul.f32 %v847, 1.442695
    %v849 = vpow.pop %v848
    %v850 = vadd.f32 %v849, 1.0
    %v851 = vrcp.pop %v850
    %v852 = vmul.f32 %v850, %v851
    %v853 = vsub.f32 1.0, %v852
    %v854 = vmul.f32 %v851, %v853
    %v855 = vadd.f32 %v851, %v854
    %vm856 = vweird.f32 %v850
    %vm857 = vweird.f32 %v851
    %vm858 = vmor %vm856, %vm857
    %v859 = vsel %vm858, %v851, %v855
    %v860 = vand.u32 2147483647, %v850
    %vm861 = vcmp.eq.f32.partialorder %v860, 8.507059e+37
    %v862 = vand.u32 %v850, 2147483648
    %v863 = vor.u32 1.1754944e-38, %v862
    %v864 = vsel %vm861, %v863, %v859
    %v865 = vmul.f32 1.0, %v864
    %v866 = vtanh.pop %v846
    %v867 = vmul.f32 %v865, %v719
    %869 = vrot.lane.b32.xlu0 %v866, 64
    %v870 = vpop.permute.xlu0 %869
    %v872 = vmul.f32 %v865, %v870
    %874 = vrot.lane.b32.xlu0 %v872, 32
    %v875 = vpop.permute.xlu0 %874
    %v877 = vadd.f32 %v867, %v875
    %v878 = vtanh.pop %v877
    %880 = vrot.lane.b32.xlu0 %v878, 64
    %v881 = vpop.permute.xlu0 %880
    %v883 = vmul.f32 %v865, %v881
    %886 = vrot.lane.b32.xlu0 %v883, 64
    %v887 = vpop.permute.xlu0 %886
    %v889 = vsel %vm180, %v823, %v887
    %v891 = vsel %vm91, %v889, 0
    %893 = vmatpush.msra.mxu0 0.0
    %894 = vmatpush.msra.mxu0 0.0
    %895 = vmatpush.msra.mxu0 0.0
    %896 = vmatpush.msra.mxu0 0.0
    %897 = vmatpush.msra.mxu0 0.0
    %898 = vmatpush.msra.mxu0 0.0
    %899 = vmatpush.msra.mxu0 0.0
    %900 = vmatpush.msra.mxu0 0.0
    %901 = vmatpush.msra.mxu0 %v48
    %902 = vmatpush.msra.mxu0 %v46
    %903 = vmatpush.msra.mxu0 %v44
    %904 = vmatpush.msra.mxu0 %v42
    %905 = vmatpush.msra.mxu0 %v40
    %906 = vmatpush.msra.mxu0 %v38
    %907 = vmatpush.msra.mxu0 %v36
    %908 = vmatpush.msra.mxu0 %v34
    %909 = vmatmul.f32.gmra.mxu0 %v891
    %v910 = vpop.f32.mrf.mxu0
    %v911 = vadd.f32 0.0, %v910
    %912 = vdwg.mxu0
    %913 = vmatpush.msra.mxu0 0.0
    %914 = vmatpush.msra.mxu0 0.0
    %915 = vmatpush.msra.mxu0 0.0
    %916 = vmatpush.msra.mxu0 0.0
    %917 = vmatpush.msra.mxu0 0.0
    %918 = vmatpush.msra.mxu0 0.0
    %919 = vmatpush.msra.mxu0 0.0
    %920 = vmatpush.msra.mxu0 0.0
    %921 = vmatpush.msra.mxu0 %v49
    %922 = vmatpush.msra.mxu0 %v47
    %923 = vmatpush.msra.mxu0 %v45
    %924 = vmatpush.msra.mxu0 %v43
    %925 = vmatpush.msra.mxu0 %v41
    %926 = vmatpush.msra.mxu0 %v39
    %927 = vmatpush.msra.mxu0 %v37
    %928 = vmatpush.msra.mxu0 %v35
    %929 = vmatmul.f32.gmra.mxu0 %v891
    %v930 = vpop.f32.mrf.mxu0
    %v931 = vadd.f32 0.0, %v930
    %932 = vdwg.mxu0
    %v934 = vrot.slane %v911, 6
    %v936 = vadd.f32 %v89, %v934
    %v937 = vadd.f32 %v936, %v137
    %v938 = vxor.u32 %v937, 2147483648
    %v939 = vmul.f32 %v938, 1.442695
    %v940 = vpow.pop %v939
    %v941 = vadd.f32 %v940, 1.0
    %v942 = vrcp.pop %v941
    %v943 = vmul.f32 %v941, %v942
    %v944 = vsub.f32 1.0, %v943
    %v945 = vmul.f32 %v942, %v944
    %v946 = vadd.f32 %v942, %v945
    %vm947 = vweird.f32 %v941
    %vm948 = vweird.f32 %v942
    %vm949 = vmor %vm947, %vm948
    %v950 = vsel %vm949, %v942, %v946
    %v951 = vand.u32 2147483647, %v941
    %vm952 = vcmp.eq.f32.partialorder %v951, 8.507059e+37
    %v953 = vand.u32 %v941, 2147483648
    %v954 = vor.u32 1.1754944e-38, %v953
    %v955 = vsel %vm952, %v954, %v950
    %v956 = vmul.f32 1.0, %v955
    %v957 = vtanh.pop %v937
    %v959 = vrot.slane %v814, 6
    %v961 = vmul.f32 %v956, %v959
    %963 = vrot.lane.b32.xlu0 %v957, 64
    %v964 = vpop.permute.xlu0 %963
    %v966 = vmul.f32 %v956, %v964
    %968 = vrot.lane.b32.xlu0 %v966, 32
    %v969 = vpop.permute.xlu0 %968
    %v971 = vadd.f32 %v961, %v969
    %v972 = vtanh.pop %v971
    %974 = vrot.lane.b32.xlu0 %v972, 64
    %v975 = vpop.permute.xlu0 %974
    %v977 = vmul.f32 %v956, %v975
    %v979 = vrot.slane %v977, 2
    %980 = vrot.lane.b32.xlu0 %v979, 32
    %v981 = vpop.permute.xlu0 %980
    %v982 = vsel %vm180, %v981, 0
    %984 = vmatpush.msra.mxu0 0.0
    %985 = vmatpush.msra.mxu0 0.0
    %986 = vmatpush.msra.mxu0 0.0
    %987 = vmatpush.msra.mxu0 0.0
    %988 = vmatpush.msra.mxu0 0.0
    %989 = vmatpush.msra.mxu0 0.0
    %990 = vmatpush.msra.mxu0 0.0
    %991 = vmatpush.msra.mxu0 0.0
    %992 = vmatpush.msra.mxu0 0.0
    %993 = vmatpush.msra.mxu0 0.0
    %994 = vmatpush.msra.mxu0 0.0
    %995 = vmatpush.msra.mxu0 0.0
    %996 = vmatpush.msra.mxu0 %v54
    %997 = vmatpush.msra.mxu0 %v53
    %998 = vmatpush.msra.mxu0 %v52
    %999 = vmatpush.msra.mxu0 %v51
    %1000 = vmatmul.f32.gmra.mxu0 %v982
    %v1001 = vpop.f32.mrf.mxu0
    %v1002 = vadd.f32 %v931, %v1001
    %1003 = vdwg.mxu0
    %v1004 = vadd.f32 %v1002, %v204
    %v1005 = vxor.u32 %v1004, 2147483648
    %v1006 = vmul.f32 %v1005, 1.442695
    %v1007 = vpow.pop %v1006
    %v1008 = vadd.f32 %v1007, 1.0
    %v1009 = vrcp.pop %v1008
    %v1010 = vmul.f32 %v1008, %v1009
    %v1011 = vsub.f32 1.0, %v1010
    %v1012 = vmul.f32 %v1009, %v1011
    %v1013 = vadd.f32 %v1009, %v1012
    %vm1014 = vweird.f32 %v1008
    %vm1015 = vweird.f32 %v1009
    %vm1016 = vmor %vm1014, %vm1015
    %v1017 = vsel %vm1016, %v1009, %v1013
    %v1018 = vand.u32 2147483647, %v1008
    %vm1019 = vcmp.eq.f32.partialorder %v1018, 8.507059e+37
    %v1020 = vand.u32 %v1008, 2147483648
    %v1021 = vor.u32 1.1754944e-38, %v1020
    %v1022 = vsel %vm1019, %v1021, %v1017
    %v1023 = vmul.f32 1.0, %v1022
    %v1024 = vtanh.pop %v1004
    %v1025 = vmul.f32 %v1023, %v877
    %1027 = vrot.lane.b32.xlu0 %v1024, 64
    %v1028 = vpop.permute.xlu0 %1027
    %v1030 = vmul.f32 %v1023, %v1028
    %1032 = vrot.lane.b32.xlu0 %v1030, 32
    %v1033 = vpop.permute.xlu0 %1032
    %v1035 = vadd.f32 %v1025, %v1033
    %v1036 = vtanh.pop %v1035
    %1038 = vrot.lane.b32.xlu0 %v1036, 64
    %v1039 = vpop.permute.xlu0 %1038
    %v1041 = vmul.f32 %v1023, %v1039
    %1042 = vrot.lane.b32.xlu0 %v977, 32
    %v1043 = vpop.permute.xlu0 %1042
    %v1046 = vrot.slane %v1041, 6
    %1047 = vrot.lane.b32.xlu0 %v1046, 64
    %v1048 = vpop.permute.xlu0 %1047
    %v1050 = vsel %vm180, %v1043, %v1048
    %v1052 = vrot.slane %v1050, 2
    %v1053 = vsel %vm91, %v1052, 0
    %1055 = vmatpush.msra.mxu0 0.0
    %1056 = vmatpush.msra.mxu0 0.0
    %1057 = vmatpush.msra.mxu0 0.0
    %1058 = vmatpush.msra.mxu0 0.0
    %1059 = vmatpush.msra.mxu0 0.0
    %1060 = vmatpush.msra.mxu0 0.0
    %1061 = vmatpush.msra.mxu0 0.0
    %1062 = vmatpush.msra.mxu0 0.0
    %1063 = vmatpush.msra.mxu0 %v48
    %1064 = vmatpush.msra.mxu0 %v46
    %1065 = vmatpush.msra.mxu0 %v44
    %1066 = vmatpush.msra.mxu0 %v42
    %1067 = vmatpush.msra.mxu0 %v40
    %1068 = vmatpush.msra.mxu0 %v38
    %1069 = vmatpush.msra.mxu0 %v36
    %1070 = vmatpush.msra.mxu0 %v34
    %1071 = vmatmul.f32.gmra.mxu0 %v1053
    %v1072 = vpop.f32.mrf.mxu0
    %v1073 = vadd.f32 0.0, %v1072
    %1074 = vdwg.mxu0
    %1075 = vmatpush.msra.mxu0 0.0
    %1076 = vmatpush.msra.mxu0 0.0
    %1077 = vmatpush.msra.mxu0 0.0
    %1078 = vmatpush.msra.mxu0 0.0
    %1079 = vmatpush.msra.mxu0 0.0
    %1080 = vmatpush.msra.mxu0 0.0
    %1081 = vmatpush.msra.mxu0 0.0
    %1082 = vmatpush.msra.mxu0 0.0
    %1083 = vmatpush.msra.mxu0 %v49
    %1084 = vmatpush.msra.mxu0 %v47
    %1085 = vmatpush.msra.mxu0 %v45
    %1086 = vmatpush.msra.mxu0 %v43
    %1087 = vmatpush.msra.mxu0 %v41
    %1088 = vmatpush.msra.mxu0 %v39
    %1089 = vmatpush.msra.mxu0 %v37
    %1090 = vmatpush.msra.mxu0 %v35
    %1091 = vmatmul.f32.gmra.mxu0 %v1053
    %v1092 = vpop.f32.mrf.mxu0
    %v1093 = vadd.f32 0.0, %v1092
    %1094 = vdwg.mxu0
    %v1096 = vrot.slane %v1073, 4
    %v1098 = vadd.f32 %v89, %v1096
    %v1099 = vadd.f32 %v1098, %v137
    %v1100 = vxor.u32 %v1099, 2147483648
    %v1101 = vmul.f32 %v1100, 1.442695
    %v1102 = vpow.pop %v1101
    %v1103 = vadd.f32 %v1102, 1.0
    %v1104 = vrcp.pop %v1103
    %v1105 = vmul.f32 %v1103, %v1104
    %v1106 = vsub.f32 1.0, %v1105
    %v1107 = vmul.f32 %v1104, %v1106
    %v1108 = vadd.f32 %v1104, %v1107
    %vm1109 = vweird.f32 %v1103
    %vm1110 = vweird.f32 %v1104
    %vm1111 = vmor %vm1109, %vm1110
    %v1112 = vsel %vm1111, %v1104, %v1108
    %v1113 = vand.u32 2147483647, %v1103
    %vm1114 = vcmp.eq.f32.partialorder %v1113, 8.507059e+37
    %v1115 = vand.u32 %v1103, 2147483648
    %v1116 = vor.u32 1.1754944e-38, %v1115
    %v1117 = vsel %vm1114, %v1116, %v1112
    %v1118 = vmul.f32 1.0, %v1117
    %v1119 = vtanh.pop %v1099
    %v1121 = vrot.slane %v971, 6
    %v1123 = vmul.f32 %v1118, %v1121
    %1125 = vrot.lane.b32.xlu0 %v1119, 64
    %v1126 = vpop.permute.xlu0 %1125
    %v1128 = vmul.f32 %v1118, %v1126
    %1130 = vrot.lane.b32.xlu0 %v1128, 32
    %v1131 = vpop.permute.xlu0 %1130
    %v1133 = vadd.f32 %v1123, %v1131
    %v1134 = vtanh.pop %v1133
    %1136 = vrot.lane.b32.xlu0 %v1134, 64
    %v1137 = vpop.permute.xlu0 %1136
    %v1139 = vmul.f32 %v1118, %v1137
    %v1141 = vrot.slane %v1139, 4
    %1142 = vrot.lane.b32.xlu0 %v1141, 32
    %v1143 = vpop.permute.xlu0 %1142
    %v1144 = vsel %vm180, %v1143, 0
    %1146 = vmatpush.msra.mxu0 0.0
    %1147 = vmatpush.msra.mxu0 0.0
    %1148 = vmatpush.msra.mxu0 0.0
    %1149 = vmatpush.msra.mxu0 0.0
    %1150 = vmatpush.msra.mxu0 0.0
    %1151 = vmatpush.msra.mxu0 0.0
    %1152 = vmatpush.msra.mxu0 0.0
    %1153 = vmatpush.msra.mxu0 0.0
    %1154 = vmatpush.msra.mxu0 0.0
    %1155 = vmatpush.msra.mxu0 0.0
    %1156 = vmatpush.msra.mxu0 0.0
    %1157 = vmatpush.msra.mxu0 0.0
    %1158 = vmatpush.msra.mxu0 %v54
    %1159 = vmatpush.msra.mxu0 %v53
    %1160 = vmatpush.msra.mxu0 %v52
    %1161 = vmatpush.msra.mxu0 %v51
    %1162 = vmatmul.f32.gmra.mxu0 %v1144
    %v1163 = vpop.f32.mrf.mxu0
    %v1164 = vadd.f32 %v1093, %v1163
    %1165 = vdwg.mxu0
    %v1166 = vadd.f32 %v1164, %v204
    %v1167 = vxor.u32 %v1166, 2147483648
    %v1168 = vmul.f32 %v1167, 1.442695
    %v1169 = vpow.pop %v1168
    %v1170 = vadd.f32 %v1169, 1.0
    %v1171 = vrcp.pop %v1170
    %v1172 = vmul.f32 %v1170, %v1171
    %v1173 = vsub.f32 1.0, %v1172
    %v1174 = vmul.f32 %v1171, %v1173
    %v1175 = vadd.f32 %v1171, %v1174
    %vm1176 = vweird.f32 %v1170
    %vm1177 = vweird.f32 %v1171
    %vm1178 = vmor %vm1176, %vm1177
    %v1179 = vsel %vm1178, %v1171, %v1175
    %v1180 = vand.u32 2147483647, %v1170
    %vm1181 = vcmp.eq.f32.partialorder %v1180, 8.507059e+37
    %v1182 = vand.u32 %v1170, 2147483648
    %v1183 = vor.u32 1.1754944e-38, %v1182
    %v1184 = vsel %vm1181, %v1183, %v1179
    %v1185 = vmul.f32 1.0, %v1184
    %v1186 = vtanh.pop %v1166
    %v1187 = vmul.f32 %v1185, %v1035
    %1189 = vrot.lane.b32.xlu0 %v1186, 64
    %v1190 = vpop.permute.xlu0 %1189
    %v1192 = vmul.f32 %v1185, %v1190
    %1194 = vrot.lane.b32.xlu0 %v1192, 32
    %v1195 = vpop.permute.xlu0 %1194
    %v1197 = vadd.f32 %v1187, %v1195
    %v1198 = vtanh.pop %v1197
    %1200 = vrot.lane.b32.xlu0 %v1198, 64
    %v1201 = vpop.permute.xlu0 %1200
    %v1203 = vmul.f32 %v1185, %v1201
    %1204 = vrot.lane.b32.xlu0 %v1139, 32
    %v1205 = vpop.permute.xlu0 %1204
    %v1208 = vrot.slane %v1203, 4
    %1209 = vrot.lane.b32.xlu0 %v1208, 64
    %v1210 = vpop.permute.xlu0 %1209
    %v1212 = vsel %vm180, %v1205, %v1210
    %v1214 = vrot.slane %v1212, 4
    %v1215 = vsel %vm91, %v1214, 0
    %1217 = vmatpush.msra.mxu0 0.0
    %1218 = vmatpush.msra.mxu0 0.0
    %1219 = vmatpush.msra.mxu0 0.0
    %1220 = vmatpush.msra.mxu0 0.0
    %1221 = vmatpush.msra.mxu0 0.0
    %1222 = vmatpush.msra.mxu0 0.0
    %1223 = vmatpush.msra.mxu0 0.0
    %1224 = vmatpush.msra.mxu0 0.0
    %1225 = vmatpush.msra.mxu0 %v48
    %1226 = vmatpush.msra.mxu0 %v46
    %1227 = vmatpush.msra.mxu0 %v44
    %1228 = vmatpush.msra.mxu0 %v42
    %1229 = vmatpush.msra.mxu0 %v40
    %1230 = vmatpush.msra.mxu0 %v38
    %1231 = vmatpush.msra.mxu0 %v36
    %1232 = vmatpush.msra.mxu0 %v34
    %1233 = vmatmul.f32.gmra.mxu0 %v1215
    %v1234 = vpop.f32.mrf.mxu0
    %v1235 = vadd.f32 0.0, %v1234
    %1236 = vdwg.mxu0
    %1237 = vmatpush.msra.mxu0 0.0
    %1238 = vmatpush.msra.mxu0 0.0
    %1239 = vmatpush.msra.mxu0 0.0
    %1240 = vmatpush.msra.mxu0 0.0
    %1241 = vmatpush.msra.mxu0 0.0
    %1242 = vmatpush.msra.mxu0 0.0
    %1243 = vmatpush.msra.mxu0 0.0
    %1244 = vmatpush.msra.mxu0 0.0
    %1245 = vmatpush.msra.mxu0 %v49
    %1246 = vmatpush.msra.mxu0 %v47
    %1247 = vmatpush.msra.mxu0 %v45
    %1248 = vmatpush.msra.mxu0 %v43
    %1249 = vmatpush.msra.mxu0 %v41
    %1250 = vmatpush.msra.mxu0 %v39
    %1251 = vmatpush.msra.mxu0 %v37
    %1252 = vmatpush.msra.mxu0 %v35
    %1253 = vmatmul.f32.gmra.mxu0 %v1215
    %v1254 = vpop.f32.mrf.mxu0
    %v1255 = vadd.f32 0.0, %v1254
    %1256 = vdwg.mxu0
    %v1258 = vrot.slane %v1235, 2
    %v1260 = vadd.f32 %v89, %v1258
    %v1261 = vadd.f32 %v1260, %v137
    %v1262 = vxor.u32 %v1261, 2147483648
    %v1263 = vmul.f32 %v1262, 1.442695
    %v1264 = vpow.pop %v1263
    %v1265 = vadd.f32 %v1264, 1.0
    %v1266 = vrcp.pop %v1265
    %v1267 = vmul.f32 %v1265, %v1266
    %v1268 = vsub.f32 1.0, %v1267
    %v1269 = vmul.f32 %v1266, %v1268
    %v1270 = vadd.f32 %v1266, %v1269
    %vm1271 = vweird.f32 %v1265
    %vm1272 = vweird.f32 %v1266
    %vm1273 = vmor %vm1271, %vm1272
    %v1274 = vsel %vm1273, %v1266, %v1270
    %v1275 = vand.u32 2147483647, %v1265
    %vm1276 = vcmp.eq.f32.partialorder %v1275, 8.507059e+37
    %v1277 = vand.u32 %v1265, 2147483648
    %v1278 = vor.u32 1.1754944e-38, %v1277
    %v1279 = vsel %vm1276, %v1278, %v1274
    %v1280 = vmul.f32 1.0, %v1279
    %v1281 = vtanh.pop %v1261
    %v1283 = vrot.slane %v1133, 6
    %v1285 = vmul.f32 %v1280, %v1283
    %1287 = vrot.lane.b32.xlu0 %v1281, 64
    %v1288 = vpop.permute.xlu0 %1287
    %v1290 = vmul.f32 %v1280, %v1288
    %1292 = vrot.lane.b32.xlu0 %v1290, 32
    %v1293 = vpop.permute.xlu0 %1292
    %v1295 = vadd.f32 %v1285, %v1293
    %v1296 = vtanh.pop %v1295
    %1298 = vrot.lane.b32.xlu0 %v1296, 64
    %v1299 = vpop.permute.xlu0 %1298
    %v1301 = vmul.f32 %v1280, %v1299
    %v1303 = vrot.slane %v1301, 6
    %1304 = vrot.lane.b32.xlu0 %v1303, 32
    %v1305 = vpop.permute.xlu0 %1304
    %v1306 = vsel %vm180, %v1305, 0
    %1308 = vmatpush.msra.mxu0 0.0
    %1309 = vmatpush.msra.mxu0 0.0
    %1310 = vmatpush.msra.mxu0 0.0
    %1311 = vmatpush.msra.mxu0 0.0
    %1312 = vmatpush.msra.mxu0 0.0
    %1313 = vmatpush.msra.mxu0 0.0
    %1314 = vmatpush.msra.mxu0 0.0
    %1315 = vmatpush.msra.mxu0 0.0
    %1316 = vmatpush.msra.mxu0 0.0
    %1317 = vmatpush.msra.mxu0 0.0
    %1318 = vmatpush.msra.mxu0 0.0
    %1319 = vmatpush.msra.mxu0 0.0
    %1320 = vmatpush.msra.mxu0 %v54
    %1321 = vmatpush.msra.mxu0 %v53
    %1322 = vmatpush.msra.mxu0 %v52
    %1323 = vmatpush.msra.mxu0 %v51
    %1324 = vmatmul.f32.gmra.mxu0 %v1306
    %v1325 = vpop.f32.mrf.mxu0
    %v1326 = vadd.f32 %v1255, %v1325
    %1327 = vdwg.mxu0
    %v1328 = vadd.f32 %v1326, %v204
    %v1329 = vxor.u32 %v1328, 2147483648
    %v1330 = vmul.f32 %v1329, 1.442695
    %v1331 = vpow.pop %v1330
    %v1332 = vadd.f32 %v1331, 1.0
    %v1333 = vrcp.pop %v1332
    %v1334 = vmul.f32 %v1332, %v1333
    %v1335 = vsub.f32 1.0, %v1334
    %v1336 = vmul.f32 %v1333, %v1335
    %v1337 = vadd.f32 %v1333, %v1336
    %vm1338 = vweird.f32 %v1332
    %vm1339 = vweird.f32 %v1333
    %vm1340 = vmor %vm1338, %vm1339
    %v1341 = vsel %vm1340, %v1333, %v1337
    %v1342 = vand.u32 2147483647, %v1332
    %vm1343 = vcmp.eq.f32.partialorder %v1342, 8.507059e+37
    %v1344 = vand.u32 %v1332, 2147483648
    %v1345 = vor.u32 1.1754944e-38, %v1344
    %v1346 = vsel %vm1343, %v1345, %v1341
    %v1347 = vmul.f32 1.0, %v1346
    %v1348 = vtanh.pop %v1328
    %v1349 = vmul.f32 %v1347, %v1197
    %1351 = vrot.lane.b32.xlu0 %v1348, 64
    %v1352 = vpop.permute.xlu0 %1351
    %v1354 = vmul.f32 %v1347, %v1352
    %1356 = vrot.lane.b32.xlu0 %v1354, 32
    %v1357 = vpop.permute.xlu0 %1356
    %v1359 = vadd.f32 %v1349, %v1357
    %v1360 = vtanh.pop %v1359
    %1362 = vrot.lane.b32.xlu0 %v1360, 64
    %v1363 = vpop.permute.xlu0 %1362
    %v1365 = vmul.f32 %v1347, %v1363
    %v1367 = vperm.slane %v60, 0
    %1370 = vrot.lane.b32.xlu0 %v1365, 32
    %v1371 = vpop.permute.xlu0 %1370
    %v1372 = vsel %vm180, %v1371, 0
    %1374 = vmatpush.msra.mxu0 0.0
    %1375 = vmatpush.msra.mxu0 0.0
    %1376 = vmatpush.msra.mxu0 0.0
    %1377 = vmatpush.msra.mxu0 0.0
    %1378 = vmatpush.msra.mxu0 0.0
    %1379 = vmatpush.msra.mxu0 0.0
    %1380 = vmatpush.msra.mxu0 0.0
    %1381 = vmatpush.msra.mxu0 0.0
    %1382 = vmatpush.msra.mxu0 0.0
    %1383 = vmatpush.msra.mxu0 0.0
    %1384 = vmatpush.msra.mxu0 0.0
    %1385 = vmatpush.msra.mxu0 0.0
    %1386 = vmatpush.msra.mxu0 %v59
    %1387 = vmatpush.msra.mxu0 %v58
    %1388 = vmatpush.msra.mxu0 %v57
    %1389 = vmatpush.msra.mxu0 %v56
    %1390 = vmatmul.f32.gmra.mxu0 %v1372
    %v1391 = vpop.f32.mrf.mxu0
    %v1392 = vadd.f32 %v1367, %v1391
    %1393 = vdwg.mxu0
    %vm1394 = vcmask 25600
    %1395 = vst.msk [vmem:[#allocation2] sm:$0x3] %vm1394, %v1392
    // Predicated region
    $region34: #{net_forward.1} parent=1 // pred_check
      _
    $region35: #{net_forward.1} parent=1 // pred_check_branch
      %1397 = sbr.rel (0) target = $region37
    $region36: #{net_forward.1} parent=1 // pred_region
      %1399 = vsyncadd [#allocation3], 0
      %s1401 = sshll.u32 [#allocation2], 4
      %s1402 = int_to_ptr.vmem [resolvable:$true] %s1401
      %s1403 = sshll.u32 %s8, 4
      %s1404 = int_to_ptr.hbm [resolvable:$true] %s1403
      %1406 = dma.vmem_to_hbm [thread:$0]  %s1402, 32, %s1404, [#allocation3]
    $region37: #{net_forward.1} parent=1 // pred_fallthru
      _
    // Predicated region
    $region38: #{net_forward.1} parent=1 // pred_check
      _
    $region39: #{net_forward.1} parent=1 // pred_check_branch
      %1408 = sbr.rel (0) target = $region41
    $region40: #{net_forward.1} parent=1 // pred_region
      %1410 = dma.done [#allocation3], 32
    $region41: #{net_forward.1} parent=1 // pred_fallthru
      _
    %1411 = vsyncpa [#allocation3], 1

</llo_original>
